<compile_context>
chip_gen: v5e
topology: v5e:2x2
jax: 0.10.0
libtpu: 0.0.40
codegen_flags: <defaults>
</compile_context>

<pallas_src>
import jax
import jax.numpy as jnp
from jax.experimental import pallas as pl
from jax.experimental.pallas import tpu as pltpu


def _leaky(x, slope=0.2):
    return jnp.where(x > 0, x, slope * x)


def _make_kernel(H, W, C, P):
    HW = H * W
    CENTER = W + 1                      # flat offset of pixel (0, 0) in the padded buffer

    def kernel(xpad_ref, w1_ref, b1_ref, w2_ref, b2_ref, o_ref):
        # xpad_ref: (1, C, LPAD)  H-padded + 1-elem guards, flat spatial on lanes
        # w1_ref:   (9, P, C)     conv1 weights, tap-major, BN1 scale folded in
        # b1_ref:   (P, 1)        folded BN1 bias
        # w2_ref:   (9, P, P)     conv2 weights, tap-major, BN2 scale folded in
        # b2_ref:   (P, 1)        folded BN2 bias
        # o_ref:    (1, P, HW)    output (lane-dense, HW multiple of 128)
        xflat = xpad_ref[0]                                        # (C, LPAD)

        # Virtual W-padding: masks zero the row-wrap element for dx=0 / dx=2 taps.
        col = jax.lax.broadcasted_iota(jnp.int32, (1, HW), 1) % W
        mask_l = (col != 0).astype(jnp.float32)                    # x == 0    invalid at dx=0
        mask_r = (col != W - 1).astype(jnp.float32)                # x == W-1  invalid at dx=2

        def conv3x3(inp_flat, w_ref, b_ref):
            # 9 accumulating matmuls on shifted flat slices — no patch buffer, no concat.
            acc = jnp.zeros((P, HW), jnp.float32)
            for dy in range(3):
                for dx in range(3):
                    s = dy * W + dx                                # static slice offset
                    xs = inp_flat[:, s:s + HW]                     # (Cin, HW)
                    if dx == 0:
                        xs = xs * mask_l
                    elif dx == 2:
                        xs = xs * mask_r
                    acc = acc + jnp.dot(w_ref[dy * 3 + dx], xs,
                                        preferred_element_type=jnp.float32)
            return acc + b_ref[...]                                # folded BN bias (P,1)

        # conv1 -> BN1(folded) -> LeakyReLU
        y1 = _leaky(conv3x3(xflat, w1_ref, b1_ref))                # (P, HW)

        # Re-pad conv1 output into the same flat layout with a single fused concat.
        zpad = jnp.zeros((P, W + 1), jnp.float32)
        y1pad = jnp.concatenate([zpad, y1, zpad], axis=1)          # (P, LPAD)

        # conv2 -> BN2(folded) -> + identity (bypass=None) -> LeakyReLU
        identity = xflat[:, CENTER:CENTER + HW]                    # already resident (C==P)
        y2 = conv3x3(y1pad, w2_ref, b2_ref) + identity
        o_ref[0] = _leaky(y2).astype(o_ref.dtype)                  # unmasked lane-dense store

    return kernel


def fold_bn(gamma, beta, mean, var, eps=1e-5):
    scale = gamma / jnp.sqrt(var + eps)
    bias = beta - mean * scale
    return scale, bias


def basic_block_forward(x_nchw, w1_oihw, bn1, w2_oihw, bn2, eps=1e-5):
    N, C, H, W = x_nchw.shape
    P = w1_oihw.shape[0]
    assert C == P, "bypass=None requires inplanes == planes"
    assert w1_oihw.shape == (P, C, 3, 3) and w2_oihw.shape == (P, P, 3, 3)
    HW = H * W
    LPAD = (H + 2) * W + 2

    s1, b1 = fold_bn(*bn1, eps)
    s2, b2 = fold_bn(*bn2, eps)

    # Fold BN scales into conv weights; reorganize OIHW -> (9 taps, P, Cin).
    w1_k = jnp.transpose(w1_oihw * s1[:, None, None, None], (2, 3, 0, 1)).reshape(9, P, C)
    w2_k = jnp.transpose(w2_oihw * s2[:, None, None, None], (2, 3, 0, 1)).reshape(9, P, P)
    b1_k = b1.reshape(P, 1)
    b2_k = b2.reshape(P, 1)

    # NCHW -> (N, C, flat spatial), zero row above/below + 1-element guard at each end:
    # pixel (y, x) lands at flat index 1 + (y+1)*W + x.
    x_flat = jnp.pad(x_nchw.reshape(N, C, HW), ((0, 0), (0, 0), (W + 1, W + 1)))

    kernel = _make_kernel(H, W, C, P)
    out_flat = pl.pallas_call(
        kernel,
        out_shape=jax.ShapeDtypeStruct((N, P, HW), x_nchw.dtype),
        grid_spec=pltpu.PrefetchScalarGridSpec(
            num_scalar_prefetch=0,
            grid=(N,),
            in_specs=[
                pl.BlockSpec((1, C, LPAD), lambda n: (n, 0, 0)),
                pl.BlockSpec((9, P, C), lambda n: (0, 0, 0)),
                pl.BlockSpec((P, 1), lambda n: (0, 0)),
                pl.BlockSpec((9, P, P), lambda n: (0, 0, 0)),
                pl.BlockSpec((P, 1), lambda n: (0, 0)),
            ],
            out_specs=pl.BlockSpec((1, P, HW), lambda n: (n, 0, 0)),
        ),
        compiler_params=pltpu.CompilerParams(
            dimension_semantics=("parallel",)),
    )(x_flat, w1_k, b1_k, w2_k, b2_k)
    return out_flat.reshape(N, P, H, W)


def reference_forward(x_nchw, w1_oihw, bn1, w2_oihw, bn2, eps=1e-5):
    """Pure-JAX NCHW reference (BatchNorm in inference mode) for verification."""
    dn = ('NCHW', 'OIHW', 'NCHW')

    def bn(y, params):
        g, b, m, v = params
        return ((y - m[None, :, None, None])
                / jnp.sqrt(v[None, :, None, None] + eps)
                * g[None, :, None, None] + b[None, :, None, None])

    y = jax.lax.conv_general_dilated(x_nchw, w1_oihw, (1, 1), 'SAME',
                                     dimension_numbers=dn)
    y = _leaky(bn(y, bn1))
    y = jax.lax.conv_general_dilated(y, w2_oihw, (1, 1), 'SAME',
                                     dimension_numbers=dn)
    y = bn(y, bn2) + x_nchw
    return _leaky(y)


if __name__ == "__main__":
    # Small shapes consistent with the module: batch=2, inplanes=planes=4, 16x16.
    N, C, H, W = 2, 4, 16, 16
    planes = C

    key = jax.random.PRNGKey(0)
    ks = jax.random.split(key, 11)

    # PyTorch-native conventions: input NCHW, conv weights OIHW.
    x_nchw = jax.random.normal(ks[0], (N, C, H, W), jnp.float32)
    w1_oihw = jax.random.normal(ks[1], (planes, C, 3, 3), jnp.float32) * 0.1
    w2_oihw = jax.random.normal(ks[2], (planes, planes, 3, 3), jnp.float32) * 0.1

    # BatchNorm parameters (inference-mode running stats), deterministic init.
    g1 = 1.0 + 0.1 * jax.random.normal(ks[3], (planes,), jnp.float32)
    be1 = 0.1 * jax.random.normal(ks[4], (planes,), jnp.float32)
    m1 = 0.1 * jax.random.normal(ks[5], (planes,), jnp.float32)
    v1 = 0.5 + jnp.abs(jax.random.normal(ks[6], (planes,), jnp.float32)) * 0.1
    g2 = 1.0 + 0.1 * jax.random.normal(ks[7], (planes,), jnp.float32)
    be2 = 0.1 * jax.random.normal(ks[8], (planes,), jnp.float32)
    m2 = 0.1 * jax.random.normal(ks[9], (planes,), jnp.float32)
    v2 = 0.5 + jnp.abs(jax.random.normal(ks[10], (planes,), jnp.float32)) * 0.1

    bn1 = (g1, be1, m1, v1)
    bn2 = (g2, be2, m2, v2)

    out = basic_block_forward(x_nchw, w1_oihw, bn1, w2_oihw, bn2)
    out = jax.block_until_ready(out)

    ref = reference_forward(x_nchw, w1_oihw, bn1, w2_oihw, bn2)
    assert out.shape == (N, planes, H, W)
    assert jnp.max(jnp.abs(out - ref)) < 1e-4

    print("KERNEL_OK")
</pallas_src>

<mosaic_0001>
module attributes {stable_mosaic.version = 11 : i64} {
  func.func @kernel(%arg0: i32, %arg1: memref<1x4x290xf32, #tpu.memory_space<vmem>>, %arg2: memref<9x4x4xf32, #tpu.memory_space<vmem>>, %arg3: memref<4x1xf32, #tpu.memory_space<vmem>>, %arg4: memref<9x4x4xf32, #tpu.memory_space<vmem>>, %arg5: memref<4x1xf32, #tpu.memory_space<vmem>>, %arg6: memref<1x4x256xf32, #tpu.memory_space<vmem>>) attributes {dimension_semantics = [#tpu.dimension_semantics<parallel>], iteration_bounds = array<i64: 2>, scalar_prefetch = 0 : i64, scratch_operands = 0 : i64, tpu.core_type = #tpu.core_type<tc>, window_params = [{transform_indices = @transform_0, window_bounds = array<i64: 1, 4, 290>}, {pipeline_mode = #tpu.pipeline_mode<synchronous>, transform_indices = @transform_1, window_bounds = array<i64: 9, 4, 4>}, {pipeline_mode = #tpu.pipeline_mode<synchronous>, transform_indices = @transform_2, window_bounds = array<i64: 4, 1>}, {pipeline_mode = #tpu.pipeline_mode<synchronous>, transform_indices = @transform_3, window_bounds = array<i64: 9, 4, 4>}, {pipeline_mode = #tpu.pipeline_mode<synchronous>, transform_indices = @transform_4, window_bounds = array<i64: 4, 1>}, {transform_indices = @transform_5, window_bounds = array<i64: 1, 4, 256>}]} {
    %c0 = arith.constant 0 : index
    %c0_0 = arith.constant 0 : index
    %c0_1 = arith.constant 0 : index
    %0 = vector.load %arg1[%c0, %c0_0, %c0_1] : memref<1x4x290xf32, #tpu.memory_space<vmem>>, vector<1x4x290xf32>
    %1 = vector.shape_cast %0 : vector<1x4x290xf32> to vector<4x290xf32>
    %2 = tpu.iota {dimensions = array<i32: 1>} : vector<1x256xi32>
    %c16_i32 = arith.constant 16 : i32
    %c0_i32 = arith.constant 0 : i32
    %3 = arith.cmpi eq, %c16_i32, %c0_i32 : i32
    %c1_i32 = arith.constant 1 : i32
    %4 = arith.select %3, %c1_i32, %c16_i32 : i32
    %5 = vector.broadcast %4 : i32 to vector<1x256xi32>
    %6 = arith.remsi %2, %5 : vector<1x256xi32>
    %c0_i32_2 = arith.constant 0 : i32
    %7 = vector.broadcast %c0_i32_2 : i32 to vector<1x256xi32>
    %8 = arith.cmpi ne, %6, %7 : vector<1x256xi32>
    %c0_i32_3 = arith.constant 0 : i32
    %9 = vector.broadcast %c0_i32_3 : i32 to vector<1x256xi32>
    %10 = arith.cmpi slt, %6, %9 : vector<1x256xi32>
    %c0_i32_4 = arith.constant 0 : i32
    %11 = arith.cmpi slt, %4, %c0_i32_4 : i32
    %12 = vector.broadcast %11 : i1 to vector<1x256xi1>
    %13 = vector.broadcast %12 : vector<1x256xi1> to vector<1x256xi1>
    %14 = arith.xori %10, %13 : vector<1x256xi1>
    %15 = arith.andi %14, %8 : vector<1x256xi1>
    %16 = vector.broadcast %4 : i32 to vector<1x256xi32>
    %17 = arith.addi %6, %16 : vector<1x256xi32>
    %18 = arith.select %15, %17, %6 : vector<1x256xi1>, vector<1x256xi32>
    %c0_i32_5 = arith.constant 0 : i32
    %19 = vector.broadcast %c0_i32_5 : i32 to vector<1x256xi32>
    %20 = arith.cmpi ne, %18, %19 : vector<1x256xi32>
    %21 = arith.extui %20 : vector<1x256xi1> to vector<1x256xi32>
    %22 = arith.sitofp %21 : vector<1x256xi32> to vector<1x256xf32>
    %c15_i32 = arith.constant 15 : i32
    %23 = vector.broadcast %c15_i32 : i32 to vector<1x256xi32>
    %24 = arith.cmpi ne, %18, %23 : vector<1x256xi32>
    %25 = arith.extui %24 : vector<1x256xi1> to vector<1x256xi32>
    %26 = arith.sitofp %25 : vector<1x256xi32> to vector<1x256xf32>
    %cst = arith.constant 0.000000e+00 : f32
    %27 = vector.broadcast %cst : f32 to vector<4x256xf32>
    %28 = vector.extract_strided_slice %1 {offsets = [0, 0], sizes = [4, 256], strides = [1, 1]} : vector<4x290xf32> to vector<4x256xf32>
    %29 = vector.broadcast %22 : vector<1x256xf32> to vector<4x256xf32>
    %30 = arith.mulf %28, %29 : vector<4x256xf32>
    %c0_6 = arith.constant 0 : index
    %c0_7 = arith.constant 0 : index
    %c0_8 = arith.constant 0 : index
    %31 = vector.load %arg2[%c0_6, %c0_7, %c0_8] : memref<9x4x4xf32, #tpu.memory_space<vmem>>, vector<1x4x4xf32>
    %32 = vector.shape_cast %31 : vector<1x4x4xf32> to vector<4x4xf32>
    %cst_9 = arith.constant dense<0.000000e+00> : vector<4x256xf32>
    %33 = tpu.matmul %32, %30, %cst_9 {dimension_numbers = #tpu.dot_dimension_numbers<[1], [0], [0], [1], [0, 0, 1, 1], [], []>} : vector<4x4xf32>, vector<4x256xf32>, vector<4x256xf32> -> vector<4x256xf32>
    %34 = arith.addf %27, %33 : vector<4x256xf32>
    %35 = vector.extract_strided_slice %1 {offsets = [0, 1], sizes = [4, 256], strides = [1, 1]} : vector<4x290xf32> to vector<4x256xf32>
    %c1 = arith.constant 1 : index
    %c0_10 = arith.constant 0 : index
    %c0_11 = arith.constant 0 : index
    %36 = vector.load %arg2[%c1, %c0_10, %c0_11] : memref<9x4x4xf32, #tpu.memory_space<vmem>>, vector<1x4x4xf32>
    %37 = vector.shape_cast %36 : vector<1x4x4xf32> to vector<4x4xf32>
    %cst_12 = arith.constant dense<0.000000e+00> : vector<4x256xf32>
    %38 = tpu.matmul %37, %35, %cst_12 {dimension_numbers = #tpu.dot_dimension_numbers<[1], [0], [0], [1], [0, 0, 1, 1], [], []>} : vector<4x4xf32>, vector<4x256xf32>, vector<4x256xf32> -> vector<4x256xf32>
    %39 = arith.addf %34, %38 : vector<4x256xf32>
    %40 = vector.extract_strided_slice %1 {offsets = [0, 2], sizes = [4, 256], strides = [1, 1]} : vector<4x290xf32> to vector<4x256xf32>
    %41 = vector.broadcast %26 : vector<1x256xf32> to vector<4x256xf32>
    %42 = arith.mulf %40, %41 : vector<4x256xf32>
    %c2 = arith.constant 2 : index
    %c0_13 = arith.constant 0 : index
    %c0_14 = arith.constant 0 : index
    %43 = vector.load %arg2[%c2, %c0_13, %c0_14] : memref<9x4x4xf32, #tpu.memory_space<vmem>>, vector<1x4x4xf32>
    %44 = vector.shape_cast %43 : vector<1x4x4xf32> to vector<4x4xf32>
    %cst_15 = arith.constant dense<0.000000e+00> : vector<4x256xf32>
    %45 = tpu.matmul %44, %42, %cst_15 {dimension_numbers = #tpu.dot_dimension_numbers<[1], [0], [0], [1], [0, 0, 1, 1], [], []>} : vector<4x4xf32>, vector<4x256xf32>, vector<4x256xf32> -> vector<4x256xf32>
    %46 = arith.addf %39, %45 : vector<4x256xf32>
    %47 = vector.extract_strided_slice %1 {offsets = [0, 16], sizes = [4, 256], strides = [1, 1]} : vector<4x290xf32> to vector<4x256xf32>
    %48 = vector.broadcast %22 : vector<1x256xf32> to vector<4x256xf32>
    %49 = arith.mulf %47, %48 : vector<4x256xf32>
    %c3 = arith.constant 3 : index
    %c0_16 = arith.constant 0 : index
    %c0_17 = arith.constant 0 : index
    %50 = vector.load %arg2[%c3, %c0_16, %c0_17] : memref<9x4x4xf32, #tpu.memory_space<vmem>>, vector<1x4x4xf32>
    %51 = vector.shape_cast %50 : vector<1x4x4xf32> to vector<4x4xf32>
    %cst_18 = arith.constant dense<0.000000e+00> : vector<4x256xf32>
    %52 = tpu.matmul %51, %49, %cst_18 {dimension_numbers = #tpu.dot_dimension_numbers<[1], [0], [0], [1], [0, 0, 1, 1], [], []>} : vector<4x4xf32>, vector<4x256xf32>, vector<4x256xf32> -> vector<4x256xf32>
    %53 = arith.addf %46, %52 : vector<4x256xf32>
    %54 = vector.extract_strided_slice %1 {offsets = [0, 17], sizes = [4, 256], strides = [1, 1]} : vector<4x290xf32> to vector<4x256xf32>
    %c4 = arith.constant 4 : index
    %c0_19 = arith.constant 0 : index
    %c0_20 = arith.constant 0 : index
    %55 = vector.load %arg2[%c4, %c0_19, %c0_20] : memref<9x4x4xf32, #tpu.memory_space<vmem>>, vector<1x4x4xf32>
    %56 = vector.shape_cast %55 : vector<1x4x4xf32> to vector<4x4xf32>
    %cst_21 = arith.constant dense<0.000000e+00> : vector<4x256xf32>
    %57 = tpu.matmul %56, %54, %cst_21 {dimension_numbers = #tpu.dot_dimension_numbers<[1], [0], [0], [1], [0, 0, 1, 1], [], []>} : vector<4x4xf32>, vector<4x256xf32>, vector<4x256xf32> -> vector<4x256xf32>
    %58 = arith.addf %53, %57 : vector<4x256xf32>
    %59 = vector.extract_strided_slice %1 {offsets = [0, 18], sizes = [4, 256], strides = [1, 1]} : vector<4x290xf32> to vector<4x256xf32>
    %60 = vector.broadcast %26 : vector<1x256xf32> to vector<4x256xf32>
    %61 = arith.mulf %59, %60 : vector<4x256xf32>
    %c5 = arith.constant 5 : index
    %c0_22 = arith.constant 0 : index
    %c0_23 = arith.constant 0 : index
    %62 = vector.load %arg2[%c5, %c0_22, %c0_23] : memref<9x4x4xf32, #tpu.memory_space<vmem>>, vector<1x4x4xf32>
    %63 = vector.shape_cast %62 : vector<1x4x4xf32> to vector<4x4xf32>
    %cst_24 = arith.constant dense<0.000000e+00> : vector<4x256xf32>
    %64 = tpu.matmul %63, %61, %cst_24 {dimension_numbers = #tpu.dot_dimension_numbers<[1], [0], [0], [1], [0, 0, 1, 1], [], []>} : vector<4x4xf32>, vector<4x256xf32>, vector<4x256xf32> -> vector<4x256xf32>
    %65 = arith.addf %58, %64 : vector<4x256xf32>
    %66 = vector.extract_strided_slice %1 {offsets = [0, 32], sizes = [4, 256], strides = [1, 1]} : vector<4x290xf32> to vector<4x256xf32>
    %67 = vector.broadcast %22 : vector<1x256xf32> to vector<4x256xf32>
    %68 = arith.mulf %66, %67 : vector<4x256xf32>
    %c6 = arith.constant 6 : index
    %c0_25 = arith.constant 0 : index
    %c0_26 = arith.constant 0 : index
    %69 = vector.load %arg2[%c6, %c0_25, %c0_26] : memref<9x4x4xf32, #tpu.memory_space<vmem>>, vector<1x4x4xf32>
    %70 = vector.shape_cast %69 : vector<1x4x4xf32> to vector<4x4xf32>
    %cst_27 = arith.constant dense<0.000000e+00> : vector<4x256xf32>
    %71 = tpu.matmul %70, %68, %cst_27 {dimension_numbers = #tpu.dot_dimension_numbers<[1], [0], [0], [1], [0, 0, 1, 1], [], []>} : vector<4x4xf32>, vector<4x256xf32>, vector<4x256xf32> -> vector<4x256xf32>
    %72 = arith.addf %65, %71 : vector<4x256xf32>
    %73 = vector.extract_strided_slice %1 {offsets = [0, 33], sizes = [4, 256], strides = [1, 1]} : vector<4x290xf32> to vector<4x256xf32>
    %c7 = arith.constant 7 : index
    %c0_28 = arith.constant 0 : index
    %c0_29 = arith.constant 0 : index
    %74 = vector.load %arg2[%c7, %c0_28, %c0_29] : memref<9x4x4xf32, #tpu.memory_space<vmem>>, vector<1x4x4xf32>
    %75 = vector.shape_cast %74 : vector<1x4x4xf32> to vector<4x4xf32>
    %cst_30 = arith.constant dense<0.000000e+00> : vector<4x256xf32>
    %76 = tpu.matmul %75, %73, %cst_30 {dimension_numbers = #tpu.dot_dimension_numbers<[1], [0], [0], [1], [0, 0, 1, 1], [], []>} : vector<4x4xf32>, vector<4x256xf32>, vector<4x256xf32> -> vector<4x256xf32>
    %77 = arith.addf %72, %76 : vector<4x256xf32>
    %78 = vector.extract_strided_slice %1 {offsets = [0, 34], sizes = [4, 256], strides = [1, 1]} : vector<4x290xf32> to vector<4x256xf32>
    %79 = vector.broadcast %26 : vector<1x256xf32> to vector<4x256xf32>
    %80 = arith.mulf %78, %79 : vector<4x256xf32>
    %c8 = arith.constant 8 : index
    %c0_31 = arith.constant 0 : index
    %c0_32 = arith.constant 0 : index
    %81 = vector.load %arg2[%c8, %c0_31, %c0_32] : memref<9x4x4xf32, #tpu.memory_space<vmem>>, vector<1x4x4xf32>
    %82 = vector.shape_cast %81 : vector<1x4x4xf32> to vector<4x4xf32>
    %cst_33 = arith.constant dense<0.000000e+00> : vector<4x256xf32>
    %83 = tpu.matmul %82, %80, %cst_33 {dimension_numbers = #tpu.dot_dimension_numbers<[1], [0], [0], [1], [0, 0, 1, 1], [], []>} : vector<4x4xf32>, vector<4x256xf32>, vector<4x256xf32> -> vector<4x256xf32>
    %84 = arith.addf %77, %83 : vector<4x256xf32>
    %c0_34 = arith.constant 0 : index
    %c0_35 = arith.constant 0 : index
    %85 = vector.load %arg3[%c0_34, %c0_35] : memref<4x1xf32, #tpu.memory_space<vmem>>, vector<4x1xf32>
    %86 = vector.broadcast %85 : vector<4x1xf32> to vector<4x256xf32>
    %87 = arith.addf %84, %86 : vector<4x256xf32>
    %cst_36 = arith.constant 0.000000e+00 : f32
    %88 = vector.broadcast %cst_36 : f32 to vector<4x256xf32>
    %89 = arith.cmpf ogt, %87, %88 : vector<4x256xf32>
    %cst_37 = arith.constant 2.000000e-01 : f32
    %90 = vector.broadcast %cst_37 : f32 to vector<4x256xf32>
    %91 = arith.mulf %90, %87 : vector<4x256xf32>
    %92 = arith.select %89, %87, %91 : vector<4x256xi1>, vector<4x256xf32>
    %cst_38 = arith.constant 0.000000e+00 : f32
    %93 = vector.broadcast %cst_38 : f32 to vector<4x17xf32>
    %94 = tpu.concatenate %93, %92, %93 in 1 : vector<4x17xf32>, vector<4x256xf32>, vector<4x17xf32> -> vector<4x290xf32>
    %95 = vector.extract_strided_slice %1 {offsets = [0, 17], sizes = [4, 256], strides = [1, 1]} : vector<4x290xf32> to vector<4x256xf32>
    %cst_39 = arith.constant 0.000000e+00 : f32
    %96 = vector.broadcast %cst_39 : f32 to vector<4x256xf32>
    %97 = vector.extract_strided_slice %94 {offsets = [0, 0], sizes = [4, 256], strides = [1, 1]} : vector<4x290xf32> to vector<4x256xf32>
    %98 = vector.broadcast %22 : vector<1x256xf32> to vector<4x256xf32>
    %99 = arith.mulf %97, %98 : vector<4x256xf32>
    %c0_40 = arith.constant 0 : index
    %c0_41 = arith.constant 0 : index
    %c0_42 = arith.constant 0 : index
    %100 = vector.load %arg4[%c0_40, %c0_41, %c0_42] : memref<9x4x4xf32, #tpu.memory_space<vmem>>, vector<1x4x4xf32>
    %101 = vector.shape_cast %100 : vector<1x4x4xf32> to vector<4x4xf32>
    %cst_43 = arith.constant dense<0.000000e+00> : vector<4x256xf32>
    %102 = tpu.matmul %101, %99, %cst_43 {dimension_numbers = #tpu.dot_dimension_numbers<[1], [0], [0], [1], [0, 0, 1, 1], [], []>} : vector<4x4xf32>, vector<4x256xf32>, vector<4x256xf32> -> vector<4x256xf32>
    %103 = arith.addf %96, %102 : vector<4x256xf32>
    %104 = vector.extract_strided_slice %94 {offsets = [0, 1], sizes = [4, 256], strides = [1, 1]} : vector<4x290xf32> to vector<4x256xf32>
    %c1_44 = arith.constant 1 : index
    %c0_45 = arith.constant 0 : index
    %c0_46 = arith.constant 0 : index
    %105 = vector.load %arg4[%c1_44, %c0_45, %c0_46] : memref<9x4x4xf32, #tpu.memory_space<vmem>>, vector<1x4x4xf32>
    %106 = vector.shape_cast %105 : vector<1x4x4xf32> to vector<4x4xf32>
    %cst_47 = arith.constant dense<0.000000e+00> : vector<4x256xf32>
    %107 = tpu.matmul %106, %104, %cst_47 {dimension_numbers = #tpu.dot_dimension_numbers<[1], [0], [0], [1], [0, 0, 1, 1], [], []>} : vector<4x4xf32>, vector<4x256xf32>, vector<4x256xf32> -> vector<4x256xf32>
    %108 = arith.addf %103, %107 : vector<4x256xf32>
    %109 = vector.extract_strided_slice %94 {offsets = [0, 2], sizes = [4, 256], strides = [1, 1]} : vector<4x290xf32> to vector<4x256xf32>
    %110 = vector.broadcast %26 : vector<1x256xf32> to vector<4x256xf32>
    %111 = arith.mulf %109, %110 : vector<4x256xf32>
    %c2_48 = arith.constant 2 : index
    %c0_49 = arith.constant 0 : index
    %c0_50 = arith.constant 0 : index
    %112 = vector.load %arg4[%c2_48, %c0_49, %c0_50] : memref<9x4x4xf32, #tpu.memory_space<vmem>>, vector<1x4x4xf32>
    %113 = vector.shape_cast %112 : vector<1x4x4xf32> to vector<4x4xf32>
    %cst_51 = arith.constant dense<0.000000e+00> : vector<4x256xf32>
    %114 = tpu.matmul %113, %111, %cst_51 {dimension_numbers = #tpu.dot_dimension_numbers<[1], [0], [0], [1], [0, 0, 1, 1], [], []>} : vector<4x4xf32>, vector<4x256xf32>, vector<4x256xf32> -> vector<4x256xf32>
    %115 = arith.addf %108, %114 : vector<4x256xf32>
    %116 = vector.extract_strided_slice %94 {offsets = [0, 16], sizes = [4, 256], strides = [1, 1]} : vector<4x290xf32> to vector<4x256xf32>
    %117 = vector.broadcast %22 : vector<1x256xf32> to vector<4x256xf32>
    %118 = arith.mulf %116, %117 : vector<4x256xf32>
    %c3_52 = arith.constant 3 : index
    %c0_53 = arith.constant 0 : index
    %c0_54 = arith.constant 0 : index
    %119 = vector.load %arg4[%c3_52, %c0_53, %c0_54] : memref<9x4x4xf32, #tpu.memory_space<vmem>>, vector<1x4x4xf32>
    %120 = vector.shape_cast %119 : vector<1x4x4xf32> to vector<4x4xf32>
    %cst_55 = arith.constant dense<0.000000e+00> : vector<4x256xf32>
    %121 = tpu.matmul %120, %118, %cst_55 {dimension_numbers = #tpu.dot_dimension_numbers<[1], [0], [0], [1], [0, 0, 1, 1], [], []>} : vector<4x4xf32>, vector<4x256xf32>, vector<4x256xf32> -> vector<4x256xf32>
    %122 = arith.addf %115, %121 : vector<4x256xf32>
    %123 = vector.extract_strided_slice %94 {offsets = [0, 17], sizes = [4, 256], strides = [1, 1]} : vector<4x290xf32> to vector<4x256xf32>
    %c4_56 = arith.constant 4 : index
    %c0_57 = arith.constant 0 : index
    %c0_58 = arith.constant 0 : index
    %124 = vector.load %arg4[%c4_56, %c0_57, %c0_58] : memref<9x4x4xf32, #tpu.memory_space<vmem>>, vector<1x4x4xf32>
    %125 = vector.shape_cast %124 : vector<1x4x4xf32> to vector<4x4xf32>
    %cst_59 = arith.constant dense<0.000000e+00> : vector<4x256xf32>
    %126 = tpu.matmul %125, %123, %cst_59 {dimension_numbers = #tpu.dot_dimension_numbers<[1], [0], [0], [1], [0, 0, 1, 1], [], []>} : vector<4x4xf32>, vector<4x256xf32>, vector<4x256xf32> -> vector<4x256xf32>
    %127 = arith.addf %122, %126 : vector<4x256xf32>
    %128 = vector.extract_strided_slice %94 {offsets = [0, 18], sizes = [4, 256], strides = [1, 1]} : vector<4x290xf32> to vector<4x256xf32>
    %129 = vector.broadcast %26 : vector<1x256xf32> to vector<4x256xf32>
    %130 = arith.mulf %128, %129 : vector<4x256xf32>
    %c5_60 = arith.constant 5 : index
    %c0_61 = arith.constant 0 : index
    %c0_62 = arith.constant 0 : index
    %131 = vector.load %arg4[%c5_60, %c0_61, %c0_62] : memref<9x4x4xf32, #tpu.memory_space<vmem>>, vector<1x4x4xf32>
    %132 = vector.shape_cast %131 : vector<1x4x4xf32> to vector<4x4xf32>
    %cst_63 = arith.constant dense<0.000000e+00> : vector<4x256xf32>
    %133 = tpu.matmul %132, %130, %cst_63 {dimension_numbers = #tpu.dot_dimension_numbers<[1], [0], [0], [1], [0, 0, 1, 1], [], []>} : vector<4x4xf32>, vector<4x256xf32>, vector<4x256xf32> -> vector<4x256xf32>
    %134 = arith.addf %127, %133 : vector<4x256xf32>
    %135 = vector.extract_strided_slice %94 {offsets = [0, 32], sizes = [4, 256], strides = [1, 1]} : vector<4x290xf32> to vector<4x256xf32>
    %136 = vector.broadcast %22 : vector<1x256xf32> to vector<4x256xf32>
    %137 = arith.mulf %135, %136 : vector<4x256xf32>
    %c6_64 = arith.constant 6 : index
    %c0_65 = arith.constant 0 : index
    %c0_66 = arith.constant 0 : index
    %138 = vector.load %arg4[%c6_64, %c0_65, %c0_66] : memref<9x4x4xf32, #tpu.memory_space<vmem>>, vector<1x4x4xf32>
    %139 = vector.shape_cast %138 : vector<1x4x4xf32> to vector<4x4xf32>
    %cst_67 = arith.constant dense<0.000000e+00> : vector<4x256xf32>
    %140 = tpu.matmul %139, %137, %cst_67 {dimension_numbers = #tpu.dot_dimension_numbers<[1], [0], [0], [1], [0, 0, 1, 1], [], []>} : vector<4x4xf32>, vector<4x256xf32>, vector<4x256xf32> -> vector<4x256xf32>
    %141 = arith.addf %134, %140 : vector<4x256xf32>
    %142 = vector.extract_strided_slice %94 {offsets = [0, 33], sizes = [4, 256], strides = [1, 1]} : vector<4x290xf32> to vector<4x256xf32>
    %c7_68 = arith.constant 7 : index
    %c0_69 = arith.constant 0 : index
    %c0_70 = arith.constant 0 : index
    %143 = vector.load %arg4[%c7_68, %c0_69, %c0_70] : memref<9x4x4xf32, #tpu.memory_space<vmem>>, vector<1x4x4xf32>
    %144 = vector.shape_cast %143 : vector<1x4x4xf32> to vector<4x4xf32>
    %cst_71 = arith.constant dense<0.000000e+00> : vector<4x256xf32>
    %145 = tpu.matmul %144, %142, %cst_71 {dimension_numbers = #tpu.dot_dimension_numbers<[1], [0], [0], [1], [0, 0, 1, 1], [], []>} : vector<4x4xf32>, vector<4x256xf32>, vector<4x256xf32> -> vector<4x256xf32>
    %146 = arith.addf %141, %145 : vector<4x256xf32>
    %147 = vector.extract_strided_slice %94 {offsets = [0, 34], sizes = [4, 256], strides = [1, 1]} : vector<4x290xf32> to vector<4x256xf32>
    %148 = vector.broadcast %26 : vector<1x256xf32> to vector<4x256xf32>
    %149 = arith.mulf %147, %148 : vector<4x256xf32>
    %c8_72 = arith.constant 8 : index
    %c0_73 = arith.constant 0 : index
    %c0_74 = arith.constant 0 : index
    %150 = vector.load %arg4[%c8_72, %c0_73, %c0_74] : memref<9x4x4xf32, #tpu.memory_space<vmem>>, vector<1x4x4xf32>
    %151 = vector.shape_cast %150 : vector<1x4x4xf32> to vector<4x4xf32>
    %cst_75 = arith.constant dense<0.000000e+00> : vector<4x256xf32>
    %152 = tpu.matmul %151, %149, %cst_75 {dimension_numbers = #tpu.dot_dimension_numbers<[1], [0], [0], [1], [0, 0, 1, 1], [], []>} : vector<4x4xf32>, vector<4x256xf32>, vector<4x256xf32> -> vector<4x256xf32>
    %153 = arith.addf %146, %152 : vector<4x256xf32>
    %c0_76 = arith.constant 0 : index
    %c0_77 = arith.constant 0 : index
    %154 = vector.load %arg5[%c0_76, %c0_77] : memref<4x1xf32, #tpu.memory_space<vmem>>, vector<4x1xf32>
    %155 = vector.broadcast %154 : vector<4x1xf32> to vector<4x256xf32>
    %156 = arith.addf %153, %155 : vector<4x256xf32>
    %157 = arith.addf %156, %95 : vector<4x256xf32>
    %cst_78 = arith.constant 0.000000e+00 : f32
    %158 = vector.broadcast %cst_78 : f32 to vector<4x256xf32>
    %159 = arith.cmpf ogt, %157, %158 : vector<4x256xf32>
    %cst_79 = arith.constant 2.000000e-01 : f32
    %160 = vector.broadcast %cst_79 : f32 to vector<4x256xf32>
    %161 = arith.mulf %160, %157 : vector<4x256xf32>
    %162 = arith.select %159, %157, %161 : vector<4x256xi1>, vector<4x256xf32>
    %c0_80 = arith.constant 0 : index
    %c0_81 = arith.constant 0 : index
    %c0_82 = arith.constant 0 : index
    %163 = vector.load %arg6[%c0_80, %c0_81, %c0_82] : memref<1x4x256xf32, #tpu.memory_space<vmem>>, vector<1x4x256xf32>
    %164 = vector.shape_cast %163 : vector<1x4x256xf32> to vector<4x256xf32>
    %165 = vector.shape_cast %162 : vector<4x256xf32> to vector<1x4x256xf32>
    tpu.vector_store %arg6[%c0_80, %c0_81, %c0_82], %165 {strides = array<i32>} : memref<1x4x256xf32, #tpu.memory_space<vmem>>, vector<1x4x256xf32>,
    return
  }
  func.func @transform_0(%arg0: i32) -> (i32, i32, i32) {
    %c0_i32 = arith.constant 0 : i32
    %c0_i32_0 = arith.constant 0 : i32
    %c0_i32_1 = arith.constant 0 : i32
    return %arg0, %c0_i32, %c0_i32_0 : i32, i32, i32
  }
  func.func @transform_1(%arg0: i32) -> (i32, i32, i32) {
    %c0_i32 = arith.constant 0 : i32
    %c0_i32_0 = arith.constant 0 : i32
    %c0_i32_1 = arith.constant 0 : i32
    %c0_i32_2 = arith.constant 0 : i32
    return %c0_i32, %c0_i32_0, %c0_i32_1 : i32, i32, i32
  }
  func.func @transform_2(%arg0: i32) -> (i32, i32) {
    %c0_i32 = arith.constant 0 : i32
    %c0_i32_0 = arith.constant 0 : i32
    %c0_i32_1 = arith.constant 0 : i32
    return %c0_i32, %c0_i32_0 : i32, i32
  }
  func.func @transform_3(%arg0: i32) -> (i32, i32, i32) {
    %c0_i32 = arith.constant 0 : i32
    %c0_i32_0 = arith.constant 0 : i32
    %c0_i32_1 = arith.constant 0 : i32
    %c0_i32_2 = arith.constant 0 : i32
    return %c0_i32, %c0_i32_0, %c0_i32_1 : i32, i32, i32
  }
  func.func @transform_4(%arg0: i32) -> (i32, i32) {
    %c0_i32 = arith.constant 0 : i32
    %c0_i32_0 = arith.constant 0 : i32
    %c0_i32_1 = arith.constant 0 : i32
    return %c0_i32, %c0_i32_0 : i32, i32
  }
  func.func @transform_5(%arg0: i32) -> (i32, i32, i32) {
    %c0_i32 = arith.constant 0 : i32
    %c0_i32_0 = arith.constant 0 : i32
    %c0_i32_1 = arith.constant 0 : i32
    return %arg0, %c0_i32, %c0_i32_0 : i32, i32, i32
  }
}

</mosaic_0001>

<llo_original>
// kernel: tpu_custom_call.1
$region0: #{tpu_custom_call.1}
  #allocation0 [shape = 'u32[]', space=smem, size = 0x4, offset = 0x4, fixed_abs, tag = 'smem constant byte address 0x4 - core index']
  #allocation1 [shape = 'u32[72,128]{1,0:T(1,128)}', space=vmem, size = 0x9000, scoped, tag = 'internal scratch']
  %s0 = inlined_call_operand.vmem [shape: f32[2,4,290], index: 0, kind: input, shape index: {}]
  %s1 = inlined_call_operand.vmem [shape: f32[9,4,4], index: 1, kind: input, shape index: {}]
  %s2 = inlined_call_operand.vmem [shape: f32[4,1], index: 2, kind: input, shape index: {}]
  %s3 = inlined_call_operand.vmem [shape: f32[9,4,4], index: 3, kind: input, shape index: {}]
  %s4 = inlined_call_operand.vmem [shape: f32[4,1], index: 4, kind: input, shape index: {}]
  %s5 = inlined_call_operand.hbm [shape: f32[2,4,256], index: 5, kind: output, shape index: {}]
  %s6 = sld [smem:[#allocation0]]
  $region53: #{tpu_custom_call.1} parent=0
    _
  %s8 = ssub.s32 1, %s6
  %s9 = scalar_select 0, %s8, %s6
  $region1: #{tpu_custom_call.1} parent=0
    #allocation2 [shape = 'u8[8192]{0}', space=vmem, size = 0x2000, scoped, tag = 'output window, operand 0']
    #allocation3 [shape = 's32[2]{0}', space=sflag, size = 0x8, scoped, tag = 'scoped memory for tpu_custom_call.1']
    %10 = vsyncpa [#allocation3], 0
    %s11 = scalar_lea.sflag [#allocation3], 1
    %12 = vsyncpa %s11, 0
    loop: start=0, step=1, limit=4
    $region2: #{tpu_custom_call.1} parent=1 // loop_pre_header
      _
    $region3: #{tpu_custom_call.1} parent=1 // loop_header
      %s14 = sphi 0, %s18
      %p15 = scmp.ge.s32.totalorder %s14, 4
      %s24 = sphi 0, %s26
      %s27 = sphi 0, %s24
      %s28 = sphi 0, %s27
      %s44 = sphi 0, %s28
      %s48 = sphi 0, %s48
      %s50 = sphi 0, %s48
      %s51 = sphi 0, %s50
      %s65 = sphi 0, %s51
      %s69 = sphi 0, %s69
      %s71 = sphi 0, %s69
      %s72 = sphi 0, %s71
      %s86 = sphi 0, %s72
      %s90 = sphi 0, %s90
      %s92 = sphi 0, %s90
      %s93 = sphi 0, %s92
      %s107 = sphi 0, %s93
      %s111 = sphi 0, %s111
      %s113 = sphi 0, %s111
      %s114 = sphi 0, %s113
      %s128 = sphi 0, %s114
      %s134 = sphi 0, %s136
      %s137 = sphi 0, %s134
      %s138 = sphi 0, %s137
      %s154 = sphi 0, %s138
    $region4: #{tpu_custom_call.1} parent=1 // loop_header_branch
      %17 = sbr.rel (%p15) target = $region8
    $region5: #{tpu_custom_call.1} parent=1 // loop_body
      %s19 = ssub.s32 %s14, 1
      %s20 = ssub.s32 %s14, 2
      %s21 = sadd.s32 %s14, 1
      %s22 = ssub.s32 %s14, %s21
      %p23 = scmp.eq.s32.totalorder %s22, 0
      %s25 = sadd.s32 %s24, 1
      %s26 = scalar_select %p23, %s24, %s25
      %p29 = pneg %p23
      %p30 = scmp.eq.s32.totalorder %s14, 1
      %p31 = por %p29, %p30
      %p32 = scmp.ne.s32.totalorder %s24, %s27
      %p33 = scmp.eq.s32.totalorder %s14, 0
      %p34 = por %p32, %p33
      %p35 = scmp.ne.s32.totalorder %s24, %s27
      %p36 = scmp.eq.s32.totalorder %s19, 1
      %p37 = por %p35, %p36
      %p38 = scmp.ne.s32.totalorder %s27, %s28
      %p39 = scmp.eq.s32.totalorder %s19, 0
      %p40 = por %p38, %p39
      %p41 = scmp.ne.s32.totalorder %s27, %s28
      %p42 = scmp.eq.s32.totalorder %s20, 1
      %p43 = por %p41, %p42
      %p45 = scmp.ne.s32.totalorder %s28, %s44
      %p46 = scmp.eq.s32.totalorder %s20, 0
      %p47 = por %p45, %p46
      %s49 = sadd.s32 %s48, 1
      %p52 = scmp.eq.s32.totalorder %s14, 1
      %p53 = scmp.ne.s32.totalorder %s48, %s50
      %p54 = scmp.eq.s32.totalorder %s14, 0
      %p55 = por %p53, %p54
      %p56 = scmp.ne.s32.totalorder %s48, %s50
      %p57 = scmp.eq.s32.totalorder %s19, 1
      %p58 = por %p56, %p57
      %p59 = scmp.ne.s32.totalorder %s50, %s51
      %p60 = scmp.eq.s32.totalorder %s19, 0
      %p61 = por %p59, %p60
      %p62 = scmp.ne.s32.totalorder %s50, %s51
      %p63 = scmp.eq.s32.totalorder %s20, 1
      %p64 = por %p62, %p63
      %p66 = scmp.ne.s32.totalorder %s51, %s65
      %p67 = scmp.eq.s32.totalorder %s20, 0
      %p68 = por %p66, %p67
      %s70 = sadd.s32 %s69, 1
      %p73 = scmp.eq.s32.totalorder %s14, 1
      %p74 = scmp.ne.s32.totalorder %s69, %s71
      %p75 = scmp.eq.s32.totalorder %s14, 0
      %p76 = por %p74, %p75
      %p77 = scmp.ne.s32.totalorder %s69, %s71
      %p78 = scmp.eq.s32.totalorder %s19, 1
      %p79 = por %p77, %p78
      %p80 = scmp.ne.s32.totalorder %s71, %s72
      %p81 = scmp.eq.s32.totalorder %s19, 0
      %p82 = por %p80, %p81
      %p83 = scmp.ne.s32.totalorder %s71, %s72
      %p84 = scmp.eq.s32.totalorder %s20, 1
      %p85 = por %p83, %p84
      %p87 = scmp.ne.s32.totalorder %s72, %s86
      %p88 = scmp.eq.s32.totalorder %s20, 0
      %p89 = por %p87, %p88
      %s91 = sadd.s32 %s90, 1
      %p94 = scmp.eq.s32.totalorder %s14, 1
      %p95 = scmp.ne.s32.totalorder %s90, %s92
      %p96 = scmp.eq.s32.totalorder %s14, 0
      %p97 = por %p95, %p96
      %p98 = scmp.ne.s32.totalorder %s90, %s92
      %p99 = scmp.eq.s32.totalorder %s19, 1
      %p100 = por %p98, %p99
      %p101 = scmp.ne.s32.totalorder %s92, %s93
      %p102 = scmp.eq.s32.totalorder %s19, 0
      %p103 = por %p101, %p102
      %p104 = scmp.ne.s32.totalorder %s92, %s93
      %p105 = scmp.eq.s32.totalorder %s20, 1
      %p106 = por %p104, %p105
      %p108 = scmp.ne.s32.totalorder %s93, %s107
      %p109 = scmp.eq.s32.totalorder %s20, 0
      %p110 = por %p108, %p109
      %s112 = sadd.s32 %s111, 1
      %p115 = scmp.eq.s32.totalorder %s14, 1
      %p116 = scmp.ne.s32.totalorder %s111, %s113
      %p117 = scmp.eq.s32.totalorder %s14, 0
      %p118 = por %p116, %p117
      %p119 = scmp.ne.s32.totalorder %s111, %s113
      %p120 = scmp.eq.s32.totalorder %s19, 1
      %p121 = por %p119, %p120
      %p122 = scmp.ne.s32.totalorder %s113, %s114
      %p123 = scmp.eq.s32.totalorder %s19, 0
      %p124 = por %p122, %p123
      %p125 = scmp.ne.s32.totalorder %s113, %s114
      %p126 = scmp.eq.s32.totalorder %s20, 1
      %p127 = por %p125, %p126
      %p129 = scmp.ne.s32.totalorder %s114, %s128
      %p130 = scmp.eq.s32.totalorder %s20, 0
      %p131 = por %p129, %p130
      %s132 = ssub.s32 %s14, %s21
      %p133 = scmp.eq.s32.totalorder %s132, 0
      %s135 = sadd.s32 %s134, 1
      %s136 = scalar_select %p133, %s134, %s135
      %p139 = pneg %p133
      %p140 = scmp.eq.s32.totalorder %s14, 1
      %p141 = por %p139, %p140
      %p142 = scmp.ne.s32.totalorder %s134, %s137
      %p143 = scmp.eq.s32.totalorder %s14, 0
      %p144 = por %p142, %p143
      %p145 = scmp.ne.s32.totalorder %s134, %s137
      %p146 = scmp.eq.s32.totalorder %s19, 1
      %p147 = por %p145, %p146
      %p148 = scmp.ne.s32.totalorder %s137, %s138
      %p149 = scmp.eq.s32.totalorder %s19, 0
      %p150 = por %p148, %p149
      %p151 = scmp.ne.s32.totalorder %s137, %s138
      %p152 = scmp.eq.s32.totalorder %s20, 1
      %p153 = por %p151, %p152
      %p155 = scmp.ne.s32.totalorder %s138, %s154
      %p156 = scmp.eq.s32.totalorder %s20, 0
      %p157 = por %p155, %p156
      %p158 = scmp.le.s32.totalorder 1, %s14
      %p159 = scmp.lt.s32.totalorder %s14, 3
      %p160 = pnand %p158, %p159
      %p161 = pneg %p160
      // Predicated region
      $region9: #{tpu_custom_call.1} parent=5 // pred_check
        _
      $region10: #{tpu_custom_call.1} parent=5 // pred_check_branch
        %163 = sbr.rel (%p160) target = $region12
      $region11: #{tpu_custom_call.1} parent=5 // pred_region
        %s164 = ssub.s32 %s14, 1
        // Predicated region
        $region13: #{tpu_custom_call.1} parent=11 // pred_check
          %p165 = pneg %p61
        $region14: #{tpu_custom_call.1} parent=11 // pred_check_branch
          %167 = sbr.rel (%p165) target = $region16
        $region15: #{tpu_custom_call.1} parent=11 // pred_region
          _
        $region16: #{tpu_custom_call.1} parent=11 // pred_fallthru
          _
        // Predicated region
        $region17: #{tpu_custom_call.1} parent=11 // pred_check
          %p168 = pneg %p82
        $region18: #{tpu_custom_call.1} parent=11 // pred_check_branch
          %170 = sbr.rel (%p168) target = $region20
        $region19: #{tpu_custom_call.1} parent=11 // pred_region
          _
        $region20: #{tpu_custom_call.1} parent=11 // pred_fallthru
          _
        // Predicated region
        $region21: #{tpu_custom_call.1} parent=11 // pred_check
          %p171 = pneg %p103
        $region22: #{tpu_custom_call.1} parent=11 // pred_check_branch
          %173 = sbr.rel (%p171) target = $region24
        $region23: #{tpu_custom_call.1} parent=11 // pred_region
          _
        $region24: #{tpu_custom_call.1} parent=11 // pred_fallthru
          _
        // Predicated region
        $region25: #{tpu_custom_call.1} parent=11 // pred_check
          %p174 = pneg %p124
        $region26: #{tpu_custom_call.1} parent=11 // pred_check_branch
          %176 = sbr.rel (%p174) target = $region28
        $region27: #{tpu_custom_call.1} parent=11 // pred_region
          _
        $region28: #{tpu_custom_call.1} parent=11 // pred_fallthru
          _
      $region12: #{tpu_custom_call.1} parent=5 // pred_fallthru
        _
      %p177 = scmp.lt.s32.totalorder %s14, 2
      // Predicated region
      $region29: #{tpu_custom_call.1} parent=5 // pred_check
        %p178 = pneg %p177
      $region30: #{tpu_custom_call.1} parent=5 // pred_check_branch
        %180 = sbr.rel (%p178) target = $region32
      $region31: #{tpu_custom_call.1} parent=5 // pred_region
        // Predicated region
        $region33: #{tpu_custom_call.1} parent=31 // pred_check
          %p181 = pneg %p34
        $region34: #{tpu_custom_call.1} parent=31 // pred_check_branch
          %183 = sbr.rel (%p181) target = $region36
        $region35: #{tpu_custom_call.1} parent=31 // pred_region
          %p184 = scmp.lt.s32.totalorder %s14, 1
          %s185 = scalar_select %p184, %s14, 1
          %s186 = smul.addr %s185, 3
          %s187 = smul.addr %s186, 4
          %s188 = scalar_lea.vmem %s0, %s187
        $region36: #{tpu_custom_call.1} parent=31 // pred_fallthru
          _
      $region32: #{tpu_custom_call.1} parent=5 // pred_fallthru
        _
      %p189 = scmp.le.s32.totalorder 1, %s14
      %p190 = scmp.lt.s32.totalorder %s14, 3
      %p191 = pnand %p189, %p190
      %p192 = pneg %p191
      // Predicated region
      $region37: #{tpu_custom_call.1} parent=5 // pred_check
        _
      $region38: #{tpu_custom_call.1} parent=5 // pred_check_branch
        %194 = sbr.rel (%p191) target = $region40
      $region39: #{tpu_custom_call.1} parent=5 // pred_region
        %s195 = ssub.s32 %s14, 1
        %p196 = scmp.lt.s32.totalorder %s19, 1
        %s197 = scalar_select %p196, %s19, 1
        %s198 = smul.addr %s197, 3
        %s199 = smul.addr %s198, 4
        %s200 = scalar_lea.vmem %s0, %s199
        %p201 = pneg %p40
        %p202 = pneg %p37
        %p203 = pneg %p61
        %p204 = pneg %p58
        %p205 = pneg %p82
        %p206 = pneg %p79
        %p207 = pneg %p103
        %p208 = pneg %p100
        %p209 = pneg %p124
        %p210 = pneg %p121
        %p211 = pneg %p150
        %p212 = pneg %p147
        %s213 = sand.u32 %s137, 1
        %s214 = scalar_lea.sflag [#allocation3], %s213
        %s215 = sand.u32 %s137, 1
        %s216 = smul.addr %s215, 8
        %s217 = scalar_lea.vmem [#allocation2], %s216
        %p218 = scmp.lt.s32.totalorder %s19, 1
        %s219 = scalar_select %p218, %s19, 1
        %s220 = smul.addr %s219, 3
        %s221 = smul.addr %s220, 4
        %s222 = scalar_lea.vmem %s0, %s221
        %v223 = vld [vmem:[%s222] sm:$0xff]
        %v224 = vld [vmem:[%s222 + $0x8] sm:$0xf]
        %v225 = vlaneseq
        %v226 = vand.u32 %v225, 127
        %v227 = vadd.s32 %v226, 128
        %vm228 = vcmp.lt.s32.totalorder %v226, 0
        %v229 = vsub.s32 0, %v226
        %v230 = vsel %vm228, %v229, %v226
        %v231 = vshrl.u32 %v230, 4
        %v232 = vand.u32 %v230, 15
        %v233 = vsub.s32 0, %v232
        %v234 = vsel %vm228, %v233, %v232
        %vm235 = vcmp.lt.s32.totalorder %v227, 0
        %v236 = vsub.s32 0, %v227
        %v237 = vsel %vm235, %v236, %v227
        %v238 = vshrl.u32 %v237, 4
        %v239 = vand.u32 %v237, 15
        %v240 = vsub.s32 0, %v239
        %v241 = vsel %vm235, %v240, %v239
        %vm242 = vcmp.ne.s32.totalorder %v234, 0
        %vm243 = vcmp.ne.s32.totalorder %v241, 0
        %vm244 = vcmp.lt.s32.totalorder %v234, 0
        %vm245 = vcmp.lt.s32.totalorder %v241, 0
        %vm246 = vmand %vm244, %vm242
        %vm247 = vmand %vm245, %vm243
        %v248 = vadd.s32 %v234, 16
        %v249 = vadd.s32 %v241, 16
        %v250 = vsel %vm246, %v248, %v234
        %v251 = vsel %vm247, %v249, %v241
        %vm252 = vcmp.ne.s32.totalorder %v250, 0
        %vm253 = vcmp.ne.s32.totalorder %v251, 0
        %v254 = vsel %vm252, 1, 0
        %v255 = vsel %vm253, 1, 0
        %v256 = vcvt.s32.f32 %v254
        %v257 = vcvt.s32.f32 %v255
        %vm258 = vcmp.ne.s32.totalorder %v250, 15
        %vm259 = vcmp.ne.s32.totalorder %v251, 15
        %v260 = vsel %vm258, 1, 0
        %v261 = vsel %vm259, 1, 0
        %v262 = vcvt.s32.f32 %v260
        %v263 = vcvt.s32.f32 %v261
        %v266 = vrot.slane %v257, 4
        %vm267 = vcmask 1043456
        %v268 = vsel %vm267, %v256, %v266
        %v270 = vmul.f32 %v223, %v268
        %v271 = vld [vmem:[%s1] sm:$0xf]
        %s272 = scalar_lea.vmem %s1, 4
        %v273 = vld [vmem:[%s272] sm:$0xf]
        %276 = vst [vmem:[#allocation1] ss:$2 sm:$0xff] %v223
        %s277 = scalar_lea.vmem [#allocation1], 16
        %278 = vst [vmem:[%s277] ss:$2 sm:$0xff] %v224
        %v279 = vld.sshfl [vmem:[#allocation1] sm:$0xff pattern:$0x75316420]
        %v280 = vld.sshfl [vmem:[#allocation1 + $0x8] sm:$0xff pattern:$0x75316420]
        %v281 = vld.sshfl [vmem:[#allocation1 + $0x10] sm:$0xff pattern:$0x75316420]
        %282 = vrot.lane.b32.xlu0 %v279, 127
        %v283 = vpop.permute.xlu0 %282
        %284 = vrot.lane.b32.xlu0 %v280, 127
        %v285 = vpop.permute.xlu0 %284
        %286 = vrot.lane.b32.xlu0 %v281, 127
        %v287 = vpop.permute.xlu0 %286
        %vm288 = vcmask 1039360
        %v289 = vsel %vm288, %v283, %v285
        %v290 = vsel %vm288, %v285, %v287
        %vm291 = vcmask 31744
        %v293 = vsel %vm291, %v273, 0
        %v295 = vsel %vm267, %v289, 0
        %v297 = vsel %vm267, %v290, 0
        %299 = vmatpush.msra.mxu0 0.0
        %300 = vmatpush.msra.mxu0 0.0
        %301 = vmatpush.msra.mxu0 0.0
        %302 = vmatpush.msra.mxu0 0.0
        %303 = vmatpush.msra.mxu0 0.0
        %304 = vmatpush.msra.mxu0 0.0
        %305 = vmatpush.msra.mxu0 0.0
        %306 = vmatpush.msra.mxu0 0.0
        %307 = vmatpush.msra.mxu0 0.0
        %308 = vmatpush.msra.mxu0 0.0
        %309 = vmatpush.msra.mxu0 0.0
        %310 = vmatpush.msra.mxu0 0.0
        %311 = vmatpush.msra.mxu0 0.0
        %312 = vmatpush.msra.mxu0 0.0
        %313 = vmatpush.msra.mxu0 0.0
        %314 = vmatpush.msra.mxu0 %v295
        %315 = vmatmul.f32.gmra.mxu0 %v293
        %v316 = vpop.f32.mrf.mxu0
        %v317 = vadd.f32 0.0, %v316
        %318 = vdwg.mxu0
        %319 = vmatpush.msra.mxu0 0.0
        %320 = vmatpush.msra.mxu0 0.0
        %321 = vmatpush.msra.mxu0 0.0
        %322 = vmatpush.msra.mxu0 0.0
        %323 = vmatpush.msra.mxu0 0.0
        %324 = vmatpush.msra.mxu0 0.0
        %325 = vmatpush.msra.mxu0 0.0
        %326 = vmatpush.msra.mxu0 0.0
        %327 = vmatpush.msra.mxu0 0.0
        %328 = vmatpush.msra.mxu0 0.0
        %329 = vmatpush.msra.mxu0 0.0
        %330 = vmatpush.msra.mxu0 0.0
        %331 = vmatpush.msra.mxu0 0.0
        %332 = vmatpush.msra.mxu0 0.0
        %333 = vmatpush.msra.mxu0 0.0
        %334 = vmatpush.msra.mxu0 %v297
        %335 = vmatmul.f32.gmra.mxu0 %v293
        %v336 = vpop.f32.mrf.mxu0
        %v337 = vadd.f32 0.0, %v336
        %338 = vdwg.mxu0
        %340 = vst [vmem:[#allocation1] ss:$2 sm:$0xff] %v270
        %v341 = vld.sshfl [vmem:[#allocation1] sm:$0xff pattern:$0x75316420]
        %v342 = vld.sshfl [vmem:[#allocation1 + $0x8] sm:$0xff pattern:$0x75316420]
        %v344 = vsel %vm291, %v271, 0
        %v346 = vsel %vm267, %v341, 0
        %v348 = vsel %vm267, %v342, 0
        %350 = vmatpush.msra.mxu0 0.0
        %351 = vmatpush.msra.mxu0 0.0
        %352 = vmatpush.msra.mxu0 0.0
        %353 = vmatpush.msra.mxu0 0.0
        %354 = vmatpush.msra.mxu0 0.0
        %355 = vmatpush.msra.mxu0 0.0
        %356 = vmatpush.msra.mxu0 0.0
        %357 = vmatpush.msra.mxu0 0.0
        %358 = vmatpush.msra.mxu0 0.0
        %359 = vmatpush.msra.mxu0 0.0
        %360 = vmatpush.msra.mxu0 0.0
        %361 = vmatpush.msra.mxu0 0.0
        %362 = vmatpush.msra.mxu0 0.0
        %363 = vmatpush.msra.mxu0 0.0
        %364 = vmatpush.msra.mxu0 0.0
        %365 = vmatpush.msra.mxu0 %v346
        %366 = vmatmul.f32.gmra.mxu0 %v344
        %v367 = vpop.f32.mrf.mxu0
        %v368 = vadd.f32 %v317, %v367
        %369 = vdwg.mxu0
        %370 = vmatpush.msra.mxu0 0.0
        %371 = vmatpush.msra.mxu0 0.0
        %372 = vmatpush.msra.mxu0 0.0
        %373 = vmatpush.msra.mxu0 0.0
        %374 = vmatpush.msra.mxu0 0.0
        %375 = vmatpush.msra.mxu0 0.0
        %376 = vmatpush.msra.mxu0 0.0
        %377 = vmatpush.msra.mxu0 0.0
        %378 = vmatpush.msra.mxu0 0.0
        %379 = vmatpush.msra.mxu0 0.0
        %380 = vmatpush.msra.mxu0 0.0
        %381 = vmatpush.msra.mxu0 0.0
        %382 = vmatpush.msra.mxu0 0.0
        %383 = vmatpush.msra.mxu0 0.0
        %384 = vmatpush.msra.mxu0 0.0
        %385 = vmatpush.msra.mxu0 %v348
        %386 = vmatmul.f32.gmra.mxu0 %v344
        %v387 = vpop.f32.mrf.mxu0
        %v388 = vadd.f32 %v337, %v387
        %389 = vdwg.mxu0
        %v392 = vrot.slane %v263, 4
        %v393 = vsel %vm267, %v262, %v392
        %394 = vrot.lane.b32.xlu0 %v393, 2
        %v395 = vpop.permute.xlu0 %394
        %v396 = vrot.slane %v395, 4
        %vm397 = vcmask 15360
        %v398 = vsel %vm397, %v396, %v395
        %v401 = vmul.f32 %v223, %v398
        %v402 = vmul.f32 %v224, %v396
        %s403 = scalar_lea.vmem %s1, 8
        %v404 = vld [vmem:[%s403] sm:$0xf]
        %407 = vst [vmem:[#allocation1] ss:$2 sm:$0xff] %v401
        %s408 = scalar_lea.vmem [#allocation1], 16
        %409 = vst [vmem:[%s408] ss:$2 sm:$0xff] %v402
        %v410 = vld.sshfl [vmem:[#allocation1] sm:$0xff pattern:$0x75316420]
        %v411 = vld.sshfl [vmem:[#allocation1 + $0x8] sm:$0xff pattern:$0x75316420]
        %v412 = vld.sshfl [vmem:[#allocation1 + $0x10] sm:$0xff pattern:$0x75316420]
        %413 = vrot.lane.b32.xlu0 %v410, 126
        %v414 = vpop.permute.xlu0 %413
        %415 = vrot.lane.b32.xlu0 %v411, 126
        %v416 = vpop.permute.xlu0 %415
        %417 = vrot.lane.b32.xlu0 %v412, 126
        %v418 = vpop.permute.xlu0 %417
        %vm419 = vcmask 1031168
        %v420 = vsel %vm419, %v414, %v416
        %v421 = vsel %vm419, %v416, %v418
        %v423 = vsel %vm291, %v404, 0
        %v425 = vsel %vm267, %v420, 0
        %v427 = vsel %vm267, %v421, 0
        %429 = vmatpush.msra.mxu0 0.0
        %430 = vmatpush.msra.mxu0 0.0
        %431 = vmatpush.msra.mxu0 0.0
        %432 = vmatpush.msra.mxu0 0.0
        %433 = vmatpush.msra.mxu0 0.0
        %434 = vmatpush.msra.mxu0 0.0
        %435 = vmatpush.msra.mxu0 0.0
        %436 = vmatpush.msra.mxu0 0.0
        %437 = vmatpush.msra.mxu0 0.0
        %438 = vmatpush.msra.mxu0 0.0
        %439 = vmatpush.msra.mxu0 0.0
        %440 = vmatpush.msra.mxu0 0.0
        %441 = vmatpush.msra.mxu0 0.0
        %442 = vmatpush.msra.mxu0 0.0
        %443 = vmatpush.msra.mxu0 0.0
        %444 = vmatpush.msra.mxu0 %v425
        %445 = vmatmul.f32.gmra.mxu0 %v423
        %v446 = vpop.f32.mrf.mxu0
        %v447 = vadd.f32 0.0, %v446
        %448 = vdwg.mxu0
        %449 = vmatpush.msra.mxu0 0.0
        %450 = vmatpush.msra.mxu0 0.0
        %451 = vmatpush.msra.mxu0 0.0
        %452 = vmatpush.msra.mxu0 0.0
        %453 = vmatpush.msra.mxu0 0.0
        %454 = vmatpush.msra.mxu0 0.0
        %455 = vmatpush.msra.mxu0 0.0
        %456 = vmatpush.msra.mxu0 0.0
        %457 = vmatpush.msra.mxu0 0.0
        %458 = vmatpush.msra.mxu0 0.0
        %459 = vmatpush.msra.mxu0 0.0
        %460 = vmatpush.msra.mxu0 0.0
        %461 = vmatpush.msra.mxu0 0.0
        %462 = vmatpush.msra.mxu0 0.0
        %463 = vmatpush.msra.mxu0 0.0
        %464 = vmatpush.msra.mxu0 %v427
        %465 = vmatmul.f32.gmra.mxu0 %v423
        %v466 = vpop.f32.mrf.mxu0
        %v467 = vadd.f32 0.0, %v466
        %468 = vdwg.mxu0
        %v469 = vadd.f32 %v368, %v447
        %v470 = vadd.f32 %v388, %v467
        %471 = vrot.lane.b32.xlu0 %v268, 16
        %v472 = vpop.permute.xlu0 %471
        %v473 = vrot.slane %v472, 4
        %vm474 = vcmask 130048
        %v475 = vsel %vm474, %v473, %v472
        %v478 = vmul.f32 %v223, %v475
        %v479 = vmul.f32 %v224, %v473
        %s480 = scalar_lea.vmem %s1, 12
        %v481 = vld [vmem:[%s480] sm:$0xf]
        %484 = vst [vmem:[#allocation1] ss:$2 sm:$0xff] %v478
        %s485 = scalar_lea.vmem [#allocation1], 16
        %486 = vst [vmem:[%s485] ss:$2 sm:$0xff] %v479
        %v487 = vld.sshfl [vmem:[#allocation1] sm:$0xff pattern:$0x75316420]
        %v488 = vld.sshfl [vmem:[#allocation1 + $0x8] sm:$0xff pattern:$0x75316420]
        %v489 = vld.sshfl [vmem:[#allocation1 + $0x10] sm:$0xff pattern:$0x75316420]
        %490 = vrot.lane.b32.xlu0 %v487, 112
        %v491 = vpop.permute.xlu0 %490
        %492 = vrot.lane.b32.xlu0 %v488, 112
        %v493 = vpop.permute.xlu0 %492
        %494 = vrot.lane.b32.xlu0 %v489, 112
        %v495 = vpop.permute.xlu0 %494
        %vm496 = vcmask 916480
        %v497 = vsel %vm496, %v491, %v493
        %v498 = vsel %vm496, %v493, %v495
        %v500 = vsel %vm291, %v481, 0
        %v502 = vsel %vm267, %v497, 0
        %v504 = vsel %vm267, %v498, 0
        %506 = vmatpush.msra.mxu0 0.0
        %507 = vmatpush.msra.mxu0 0.0
        %508 = vmatpush.msra.mxu0 0.0
        %509 = vmatpush.msra.mxu0 0.0
        %510 = vmatpush.msra.mxu0 0.0
        %511 = vmatpush.msra.mxu0 0.0
        %512 = vmatpush.msra.mxu0 0.0
        %513 = vmatpush.msra.mxu0 0.0
        %514 = vmatpush.msra.mxu0 0.0
        %515 = vmatpush.msra.mxu0 0.0
        %516 = vmatpush.msra.mxu0 0.0
        %517 = vmatpush.msra.mxu0 0.0
        %518 = vmatpush.msra.mxu0 0.0
        %519 = vmatpush.msra.mxu0 0.0
        %520 = vmatpush.msra.mxu0 0.0
        %521 = vmatpush.msra.mxu0 %v502
        %522 = vmatmul.f32.gmra.mxu0 %v500
        %v523 = vpop.f32.mrf.mxu0
        %v524 = vadd.f32 0.0, %v523
        %525 = vdwg.mxu0
        %526 = vmatpush.msra.mxu0 0.0
        %527 = vmatpush.msra.mxu0 0.0
        %528 = vmatpush.msra.mxu0 0.0
        %529 = vmatpush.msra.mxu0 0.0
        %530 = vmatpush.msra.mxu0 0.0
        %531 = vmatpush.msra.mxu0 0.0
        %532 = vmatpush.msra.mxu0 0.0
        %533 = vmatpush.msra.mxu0 0.0
        %534 = vmatpush.msra.mxu0 0.0
        %535 = vmatpush.msra.mxu0 0.0
        %536 = vmatpush.msra.mxu0 0.0
        %537 = vmatpush.msra.mxu0 0.0
        %538 = vmatpush.msra.mxu0 0.0
        %539 = vmatpush.msra.mxu0 0.0
        %540 = vmatpush.msra.mxu0 0.0
        %541 = vmatpush.msra.mxu0 %v504
        %542 = vmatmul.f32.gmra.mxu0 %v500
        %v543 = vpop.f32.mrf.mxu0
        %v544 = vadd.f32 0.0, %v543
        %545 = vdwg.mxu0
        %v546 = vadd.f32 %v469, %v524
        %v547 = vadd.f32 %v470, %v544
        %s548 = scalar_lea.vmem %s1, 16
        %v549 = vld [vmem:[%s548] sm:$0xf]
        %550 = vst [vmem:[#allocation1] ss:$2 sm:$0xff] %v223
        %s551 = scalar_lea.vmem [#allocation1], 16
        %552 = vst [vmem:[%s551] ss:$2 sm:$0xff] %v224
        %v553 = vld.sshfl [vmem:[#allocation1] sm:$0xff pattern:$0x75316420]
        %v554 = vld.sshfl [vmem:[#allocation1 + $0x8] sm:$0xff pattern:$0x75316420]
        %v555 = vld.sshfl [vmem:[#allocation1 + $0x10] sm:$0xff pattern:$0x75316420]
        %556 = vrot.lane.b32.xlu0 %v553, 111
        %v557 = vpop.permute.xlu0 %556
        %558 = vrot.lane.b32.xlu0 %v554, 111
        %v559 = vpop.permute.xlu0 %558
        %560 = vrot.lane.b32.xlu0 %v555, 111
        %v561 = vpop.permute.xlu0 %560
        %vm562 = vcmask 908288
        %v563 = vsel %vm562, %v557, %v559
        %v564 = vsel %vm562, %v559, %v561
        %v566 = vsel %vm291, %v549, 0
        %v568 = vsel %vm267, %v563, 0
        %v570 = vsel %vm267, %v564, 0
        %572 = vmatpush.msra.mxu0 0.0
        %573 = vmatpush.msra.mxu0 0.0
        %574 = vmatpush.msra.mxu0 0.0
        %575 = vmatpush.msra.mxu0 0.0
        %576 = vmatpush.msra.mxu0 0.0
        %577 = vmatpush.msra.mxu0 0.0
        %578 = vmatpush.msra.mxu0 0.0
        %579 = vmatpush.msra.mxu0 0.0
        %580 = vmatpush.msra.mxu0 0.0
        %581 = vmatpush.msra.mxu0 0.0
        %582 = vmatpush.msra.mxu0 0.0
        %583 = vmatpush.msra.mxu0 0.0
        %584 = vmatpush.msra.mxu0 0.0
        %585 = vmatpush.msra.mxu0 0.0
        %586 = vmatpush.msra.mxu0 0.0
        %587 = vmatpush.msra.mxu0 %v568
        %588 = vmatmul.f32.gmra.mxu0 %v566
        %v589 = vpop.f32.mrf.mxu0
        %v590 = vadd.f32 0.0, %v589
        %591 = vdwg.mxu0
        %592 = vmatpush.msra.mxu0 0.0
        %593 = vmatpush.msra.mxu0 0.0
        %594 = vmatpush.msra.mxu0 0.0
        %595 = vmatpush.msra.mxu0 0.0
        %596 = vmatpush.msra.mxu0 0.0
        %597 = vmatpush.msra.mxu0 0.0
        %598 = vmatpush.msra.mxu0 0.0
        %599 = vmatpush.msra.mxu0 0.0
        %600 = vmatpush.msra.mxu0 0.0
        %601 = vmatpush.msra.mxu0 0.0
        %602 = vmatpush.msra.mxu0 0.0
        %603 = vmatpush.msra.mxu0 0.0
        %604 = vmatpush.msra.mxu0 0.0
        %605 = vmatpush.msra.mxu0 0.0
        %606 = vmatpush.msra.mxu0 0.0
        %607 = vmatpush.msra.mxu0 %v570
        %608 = vmatmul.f32.gmra.mxu0 %v566
        %v609 = vpop.f32.mrf.mxu0
        %v610 = vadd.f32 0.0, %v609
        %611 = vdwg.mxu0
        %v612 = vadd.f32 %v546, %v590
        %v613 = vadd.f32 %v547, %v610
        %614 = vrot.lane.b32.xlu0 %v393, 18
        %v615 = vpop.permute.xlu0 %614
        %v616 = vrot.slane %v615, 4
        %vm617 = vcmask 146432
        %v618 = vsel %vm617, %v616, %v615
        %v621 = vmul.f32 %v223, %v618
        %v622 = vmul.f32 %v224, %v616
        %s623 = scalar_lea.vmem %s1, 20
        %v624 = vld [vmem:[%s623] sm:$0xf]
        %627 = vst [vmem:[#allocation1] ss:$2 sm:$0xff] %v621
        %s628 = scalar_lea.vmem [#allocation1], 16
        %629 = vst [vmem:[%s628] ss:$2 sm:$0xff] %v622
        %v630 = vld.sshfl [vmem:[#allocation1] sm:$0xff pattern:$0x75316420]
        %v631 = vld.sshfl [vmem:[#allocation1 + $0x8] sm:$0xff pattern:$0x75316420]
        %v632 = vld.sshfl [vmem:[#allocation1 + $0x10] sm:$0xff pattern:$0x75316420]
        %633 = vrot.lane.b32.xlu0 %v630, 110
        %v634 = vpop.permute.xlu0 %633
        %635 = vrot.lane.b32.xlu0 %v631, 110
        %v636 = vpop.permute.xlu0 %635
        %637 = vrot.lane.b32.xlu0 %v632, 110
        %v638 = vpop.permute.xlu0 %637
        %vm639 = vcmask 900096
        %v640 = vsel %vm639, %v634, %v636
        %v641 = vsel %vm639, %v636, %v638
        %v643 = vsel %vm291, %v624, 0
        %v645 = vsel %vm267, %v640, 0
        %v647 = vsel %vm267, %v641, 0
        %649 = vmatpush.msra.mxu0 0.0
        %650 = vmatpush.msra.mxu0 0.0
        %651 = vmatpush.msra.mxu0 0.0
        %652 = vmatpush.msra.mxu0 0.0
        %653 = vmatpush.msra.mxu0 0.0
        %654 = vmatpush.msra.mxu0 0.0
        %655 = vmatpush.msra.mxu0 0.0
        %656 = vmatpush.msra.mxu0 0.0
        %657 = vmatpush.msra.mxu0 0.0
        %658 = vmatpush.msra.mxu0 0.0
        %659 = vmatpush.msra.mxu0 0.0
        %660 = vmatpush.msra.mxu0 0.0
        %661 = vmatpush.msra.mxu0 0.0
        %662 = vmatpush.msra.mxu0 0.0
        %663 = vmatpush.msra.mxu0 0.0
        %664 = vmatpush.msra.mxu0 %v645
        %665 = vmatmul.f32.gmra.mxu0 %v643
        %v666 = vpop.f32.mrf.mxu0
        %v667 = vadd.f32 0.0, %v666
        %668 = vdwg.mxu0
        %669 = vmatpush.msra.mxu0 0.0
        %670 = vmatpush.msra.mxu0 0.0
        %671 = vmatpush.msra.mxu0 0.0
        %672 = vmatpush.msra.mxu0 0.0
        %673 = vmatpush.msra.mxu0 0.0
        %674 = vmatpush.msra.mxu0 0.0
        %675 = vmatpush.msra.mxu0 0.0
        %676 = vmatpush.msra.mxu0 0.0
        %677 = vmatpush.msra.mxu0 0.0
        %678 = vmatpush.msra.mxu0 0.0
        %679 = vmatpush.msra.mxu0 0.0
        %680 = vmatpush.msra.mxu0 0.0
        %681 = vmatpush.msra.mxu0 0.0
        %682 = vmatpush.msra.mxu0 0.0
        %683 = vmatpush.msra.mxu0 0.0
        %684 = vmatpush.msra.mxu0 %v647
        %685 = vmatmul.f32.gmra.mxu0 %v643
        %v686 = vpop.f32.mrf.mxu0
        %v687 = vadd.f32 0.0, %v686
        %688 = vdwg.mxu0
        %v689 = vadd.f32 %v612, %v667
        %v690 = vadd.f32 %v613, %v687
        %691 = vrot.lane.b32.xlu0 %v268, 32
        %v692 = vpop.permute.xlu0 %691
        %v693 = vrot.slane %v692, 4
        %vm694 = vcmask 261120
        %v695 = vsel %vm694, %v693, %v692
        %v698 = vmul.f32 %v223, %v695
        %v699 = vmul.f32 %v224, %v693
        %s700 = scalar_lea.vmem %s1, 24
        %v701 = vld [vmem:[%s700] sm:$0xf]
        %704 = vst [vmem:[#allocation1] ss:$2 sm:$0xff] %v698
        %s705 = scalar_lea.vmem [#allocation1], 16
        %706 = vst [vmem:[%s705] ss:$2 sm:$0xff] %v699
        %v707 = vld.sshfl [vmem:[#allocation1] sm:$0xff pattern:$0x75316420]
        %v708 = vld.sshfl [vmem:[#allocation1 + $0x8] sm:$0xff pattern:$0x75316420]
        %v709 = vld.sshfl [vmem:[#allocation1 + $0x10] sm:$0xff pattern:$0x75316420]
        %710 = vrot.lane.b32.xlu0 %v707, 96
        %v711 = vpop.permute.xlu0 %710
        %712 = vrot.lane.b32.xlu0 %v708, 96
        %v713 = vpop.permute.xlu0 %712
        %714 = vrot.lane.b32.xlu0 %v709, 96
        %v715 = vpop.permute.xlu0 %714
        %vm716 = vcmask 785408
        %v717 = vsel %vm716, %v711, %v713
        %v718 = vsel %vm716, %v713, %v715
        %v720 = vsel %vm291, %v701, 0
        %v722 = vsel %vm267, %v717, 0
        %v724 = vsel %vm267, %v718, 0
        %726 = vmatpush.msra.mxu0 0.0
        %727 = vmatpush.msra.mxu0 0.0
        %728 = vmatpush.msra.mxu0 0.0
        %729 = vmatpush.msra.mxu0 0.0
        %730 = vmatpush.msra.mxu0 0.0
        %731 = vmatpush.msra.mxu0 0.0
        %732 = vmatpush.msra.mxu0 0.0
        %733 = vmatpush.msra.mxu0 0.0
        %734 = vmatpush.msra.mxu0 0.0
        %735 = vmatpush.msra.mxu0 0.0
        %736 = vmatpush.msra.mxu0 0.0
        %737 = vmatpush.msra.mxu0 0.0
        %738 = vmatpush.msra.mxu0 0.0
        %739 = vmatpush.msra.mxu0 0.0
        %740 = vmatpush.msra.mxu0 0.0
        %741 = vmatpush.msra.mxu0 %v722
        %742 = vmatmul.f32.gmra.mxu0 %v720
        %v743 = vpop.f32.mrf.mxu0
        %v744 = vadd.f32 0.0, %v743
        %745 = vdwg.mxu0
        %746 = vmatpush.msra.mxu0 0.0
        %747 = vmatpush.msra.mxu0 0.0
        %748 = vmatpush.msra.mxu0 0.0
        %749 = vmatpush.msra.mxu0 0.0
        %750 = vmatpush.msra.mxu0 0.0
        %751 = vmatpush.msra.mxu0 0.0
        %752 = vmatpush.msra.mxu0 0.0
        %753 = vmatpush.msra.mxu0 0.0
        %754 = vmatpush.msra.mxu0 0.0
        %755 = vmatpush.msra.mxu0 0.0
        %756 = vmatpush.msra.mxu0 0.0
        %757 = vmatpush.msra.mxu0 0.0
        %758 = vmatpush.msra.mxu0 0.0
        %759 = vmatpush.msra.mxu0 0.0
        %760 = vmatpush.msra.mxu0 0.0
        %761 = vmatpush.msra.mxu0 %v724
        %762 = vmatmul.f32.gmra.mxu0 %v720
        %v763 = vpop.f32.mrf.mxu0
        %v764 = vadd.f32 0.0, %v763
        %765 = vdwg.mxu0
        %v766 = vadd.f32 %v689, %v744
        %v767 = vadd.f32 %v690, %v764
        %s768 = scalar_lea.vmem %s1, 28
        %v769 = vld [vmem:[%s768] sm:$0xf]
        %770 = vst [vmem:[#allocation1] ss:$2 sm:$0xff] %v223
        %s771 = scalar_lea.vmem [#allocation1], 16
        %772 = vst [vmem:[%s771] ss:$2 sm:$0xff] %v224
        %v773 = vld.sshfl [vmem:[#allocation1] sm:$0xff pattern:$0x75316420]
        %v774 = vld.sshfl [vmem:[#allocation1 + $0x8] sm:$0xff pattern:$0x75316420]
        %v775 = vld.sshfl [vmem:[#allocation1 + $0x10] sm:$0xff pattern:$0x75316420]
        %776 = vrot.lane.b32.xlu0 %v773, 95
        %v777 = vpop.permute.xlu0 %776
        %778 = vrot.lane.b32.xlu0 %v774, 95
        %v779 = vpop.permute.xlu0 %778
        %780 = vrot.lane.b32.xlu0 %v775, 95
        %v781 = vpop.permute.xlu0 %780
        %vm782 = vcmask 777216
        %v783 = vsel %vm782, %v777, %v779
        %v784 = vsel %vm782, %v779, %v781
        %v786 = vsel %vm291, %v769, 0
        %v788 = vsel %vm267, %v783, 0
        %v790 = vsel %vm267, %v784, 0
        %792 = vmatpush.msra.mxu0 0.0
        %793 = vmatpush.msra.mxu0 0.0
        %794 = vmatpush.msra.mxu0 0.0
        %795 = vmatpush.msra.mxu0 0.0
        %796 = vmatpush.msra.mxu0 0.0
        %797 = vmatpush.msra.mxu0 0.0
        %798 = vmatpush.msra.mxu0 0.0
        %799 = vmatpush.msra.mxu0 0.0
        %800 = vmatpush.msra.mxu0 0.0
        %801 = vmatpush.msra.mxu0 0.0
        %802 = vmatpush.msra.mxu0 0.0
        %803 = vmatpush.msra.mxu0 0.0
        %804 = vmatpush.msra.mxu0 0.0
        %805 = vmatpush.msra.mxu0 0.0
        %806 = vmatpush.msra.mxu0 0.0
        %807 = vmatpush.msra.mxu0 %v788
        %808 = vmatmul.f32.gmra.mxu0 %v786
        %v809 = vpop.f32.mrf.mxu0
        %v810 = vadd.f32 0.0, %v809
        %811 = vdwg.mxu0
        %812 = vmatpush.msra.mxu0 0.0
        %813 = vmatpush.msra.mxu0 0.0
        %814 = vmatpush.msra.mxu0 0.0
        %815 = vmatpush.msra.mxu0 0.0
        %816 = vmatpush.msra.mxu0 0.0
        %817 = vmatpush.msra.mxu0 0.0
        %818 = vmatpush.msra.mxu0 0.0
        %819 = vmatpush.msra.mxu0 0.0
        %820 = vmatpush.msra.mxu0 0.0
        %821 = vmatpush.msra.mxu0 0.0
        %822 = vmatpush.msra.mxu0 0.0
        %823 = vmatpush.msra.mxu0 0.0
        %824 = vmatpush.msra.mxu0 0.0
        %825 = vmatpush.msra.mxu0 0.0
        %826 = vmatpush.msra.mxu0 0.0
        %827 = vmatpush.msra.mxu0 %v790
        %828 = vmatmul.f32.gmra.mxu0 %v786
        %v829 = vpop.f32.mrf.mxu0
        %v830 = vadd.f32 0.0, %v829
        %831 = vdwg.mxu0
        %v832 = vadd.f32 %v766, %v810
        %v833 = vadd.f32 %v767, %v830
        %834 = vrot.lane.b32.xlu0 %v393, 34
        %v835 = vpop.permute.xlu0 %834
        %v836 = vrot.slane %v835, 4
        %vm837 = vcmask 277504
        %v838 = vsel %vm837, %v836, %v835
        %v841 = vmul.f32 %v223, %v838
        %v842 = vmul.f32 %v224, %v836
        %s843 = scalar_lea.vmem %s1, 32
        %v844 = vld [vmem:[%s843] sm:$0xf]
        %847 = vst [vmem:[#allocation1] ss:$2 sm:$0xff] %v841
        %s848 = scalar_lea.vmem [#allocation1], 16
        %849 = vst [vmem:[%s848] ss:$2 sm:$0xff] %v842
        %v850 = vld.sshfl [vmem:[#allocation1] sm:$0xff pattern:$0x75316420]
        %v851 = vld.sshfl [vmem:[#allocation1 + $0x8] sm:$0xff pattern:$0x75316420]
        %v852 = vld.sshfl [vmem:[#allocation1 + $0x10] sm:$0xff pattern:$0x75316420]
        %853 = vrot.lane.b32.xlu0 %v850, 94
        %v854 = vpop.permute.xlu0 %853
        %855 = vrot.lane.b32.xlu0 %v851, 94
        %v856 = vpop.permute.xlu0 %855
        %857 = vrot.lane.b32.xlu0 %v852, 94
        %v858 = vpop.permute.xlu0 %857
        %vm859 = vcmask 769024
        %v860 = vsel %vm859, %v854, %v856
        %v861 = vsel %vm859, %v856, %v858
        %v863 = vsel %vm291, %v844, 0
        %v865 = vsel %vm267, %v860, 0
        %v867 = vsel %vm267, %v861, 0
        %869 = vmatpush.msra.mxu0 0.0
        %870 = vmatpush.msra.mxu0 0.0
        %871 = vmatpush.msra.mxu0 0.0
        %872 = vmatpush.msra.mxu0 0.0
        %873 = vmatpush.msra.mxu0 0.0
        %874 = vmatpush.msra.mxu0 0.0
        %875 = vmatpush.msra.mxu0 0.0
        %876 = vmatpush.msra.mxu0 0.0
        %877 = vmatpush.msra.mxu0 0.0
        %878 = vmatpush.msra.mxu0 0.0
        %879 = vmatpush.msra.mxu0 0.0
        %880 = vmatpush.msra.mxu0 0.0
        %881 = vmatpush.msra.mxu0 0.0
        %882 = vmatpush.msra.mxu0 0.0
        %883 = vmatpush.msra.mxu0 0.0
        %884 = vmatpush.msra.mxu0 %v865
        %885 = vmatmul.f32.gmra.mxu0 %v863
        %v886 = vpop.f32.mrf.mxu0
        %v887 = vadd.f32 0.0, %v886
        %888 = vdwg.mxu0
        %889 = vmatpush.msra.mxu0 0.0
        %890 = vmatpush.msra.mxu0 0.0
        %891 = vmatpush.msra.mxu0 0.0
        %892 = vmatpush.msra.mxu0 0.0
        %893 = vmatpush.msra.mxu0 0.0
        %894 = vmatpush.msra.mxu0 0.0
        %895 = vmatpush.msra.mxu0 0.0
        %896 = vmatpush.msra.mxu0 0.0
        %897 = vmatpush.msra.mxu0 0.0
        %898 = vmatpush.msra.mxu0 0.0
        %899 = vmatpush.msra.mxu0 0.0
        %900 = vmatpush.msra.mxu0 0.0
        %901 = vmatpush.msra.mxu0 0.0
        %902 = vmatpush.msra.mxu0 0.0
        %903 = vmatpush.msra.mxu0 0.0
        %904 = vmatpush.msra.mxu0 %v867
        %905 = vmatmul.f32.gmra.mxu0 %v863
        %v906 = vpop.f32.mrf.mxu0
        %v907 = vadd.f32 0.0, %v906
        %908 = vdwg.mxu0
        %v909 = vadd.f32 %v832, %v887
        %v910 = vadd.f32 %v833, %v907
        %v911 = vld [vmem:[%s2] sm:$0xf]
        %913 = vset.pattern.permute.xlu0 0
        %914 = vperm.xlu0 %913, %v911
        %v915 = vpop.permute.xlu0 %914
        %v917 = vadd.f32 %v909, %v915
        %v918 = vadd.f32 %v910, %v915
        %vm919 = vcmp.gt.f32.partialorder %v917, 0.0
        %vm920 = vcmp.gt.f32.partialorder %v918, 0.0
        %v921 = vmul.f32 %v917, 0.2
        %v922 = vmul.f32 %v918, 0.2
        %v923 = vsel %vm919, %v917, %v921
        %v924 = vsel %vm920, %v918, %v922
        %927 = vrot.lane.b32.xlu0 %v923, 17
        %v928 = vpop.permute.xlu0 %927
        %929 = vrot.lane.b32.xlu0 %v924, 17
        %v930 = vpop.permute.xlu0 %929
        %vm931 = vcmask 138240
        %v932 = vsel %vm931, %v928, %v930
        %v936 = vsel %vm931, 0.0, %v928
        %v937 = vsel %vm931, %v930, 0.0
        %v938 = vmul.f32 %v936, %v256
        %v939 = vmul.f32 %v932, %v257
        %v940 = vld [vmem:[%s3] sm:$0xf]
        %s941 = scalar_lea.vmem %s3, 4
        %v942 = vld [vmem:[%s941] sm:$0xf]
        %945 = vrot.lane.b32.xlu0 %v936, 127
        %v946 = vpop.permute.xlu0 %945
        %947 = vrot.lane.b32.xlu0 %v932, 127
        %v948 = vpop.permute.xlu0 %947
        %949 = vrot.lane.b32.xlu0 %v937, 127
        %v950 = vpop.permute.xlu0 %949
        %v951 = vsel %vm288, %v946, %v948
        %v952 = vsel %vm288, %v948, %v950
        %v954 = vsel %vm291, %v942, 0
        %v956 = vsel %vm267, %v951, 0
        %v958 = vsel %vm267, %v952, 0
        %960 = vmatpush.msra.mxu0 0.0
        %961 = vmatpush.msra.mxu0 0.0
        %962 = vmatpush.msra.mxu0 0.0
        %963 = vmatpush.msra.mxu0 0.0
        %964 = vmatpush.msra.mxu0 0.0
        %965 = vmatpush.msra.mxu0 0.0
        %966 = vmatpush.msra.mxu0 0.0
        %967 = vmatpush.msra.mxu0 0.0
        %968 = vmatpush.msra.mxu0 0.0
        %969 = vmatpush.msra.mxu0 0.0
        %970 = vmatpush.msra.mxu0 0.0
        %971 = vmatpush.msra.mxu0 0.0
        %972 = vmatpush.msra.mxu0 0.0
        %973 = vmatpush.msra.mxu0 0.0
        %974 = vmatpush.msra.mxu0 0.0
        %975 = vmatpush.msra.mxu0 %v956
        %976 = vmatmul.f32.gmra.mxu0 %v954
        %v977 = vpop.f32.mrf.mxu0
        %v978 = vadd.f32 0.0, %v977
        %979 = vdwg.mxu0
        %980 = vmatpush.msra.mxu0 0.0
        %981 = vmatpush.msra.mxu0 0.0
        %982 = vmatpush.msra.mxu0 0.0
        %983 = vmatpush.msra.mxu0 0.0
        %984 = vmatpush.msra.mxu0 0.0
        %985 = vmatpush.msra.mxu0 0.0
        %986 = vmatpush.msra.mxu0 0.0
        %987 = vmatpush.msra.mxu0 0.0
        %988 = vmatpush.msra.mxu0 0.0
        %989 = vmatpush.msra.mxu0 0.0
        %990 = vmatpush.msra.mxu0 0.0
        %991 = vmatpush.msra.mxu0 0.0
        %992 = vmatpush.msra.mxu0 0.0
        %993 = vmatpush.msra.mxu0 0.0
        %994 = vmatpush.msra.mxu0 0.0
        %995 = vmatpush.msra.mxu0 %v958
        %996 = vmatmul.f32.gmra.mxu0 %v954
        %v997 = vpop.f32.mrf.mxu0
        %v998 = vadd.f32 0.0, %v997
        %999 = vdwg.mxu0
        %v1001 = vsel %vm291, %v940, 0
        %v1004 = vsel %vm267, %v938, 0
        %v1007 = vsel %vm267, %v939, 0
        %1009 = vmatpush.msra.mxu0 0.0
        %1010 = vmatpush.msra.mxu0 0.0
        %1011 = vmatpush.msra.mxu0 0.0
        %1012 = vmatpush.msra.mxu0 0.0
        %1013 = vmatpush.msra.mxu0 0.0
        %1014 = vmatpush.msra.mxu0 0.0
        %1015 = vmatpush.msra.mxu0 0.0
        %1016 = vmatpush.msra.mxu0 0.0
        %1017 = vmatpush.msra.mxu0 0.0
        %1018 = vmatpush.msra.mxu0 0.0
        %1019 = vmatpush.msra.mxu0 0.0
        %1020 = vmatpush.msra.mxu0 0.0
        %1021 = vmatpush.msra.mxu0 0.0
        %1022 = vmatpush.msra.mxu0 0.0
        %1023 = vmatpush.msra.mxu0 0.0
        %1024 = vmatpush.msra.mxu0 %v1004
        %1025 = vmatmul.f32.gmra.mxu0 %v1001
        %v1026 = vpop.f32.mrf.mxu0
        %v1027 = vadd.f32 %v978, %v1026
        %1028 = vdwg.mxu0
        %1029 = vmatpush.msra.mxu0 0.0
        %1030 = vmatpush.msra.mxu0 0.0
        %1031 = vmatpush.msra.mxu0 0.0
        %1032 = vmatpush.msra.mxu0 0.0
        %1033 = vmatpush.msra.mxu0 0.0
        %1034 = vmatpush.msra.mxu0 0.0
        %1035 = vmatpush.msra.mxu0 0.0
        %1036 = vmatpush.msra.mxu0 0.0
        %1037 = vmatpush.msra.mxu0 0.0
        %1038 = vmatpush.msra.mxu0 0.0
        %1039 = vmatpush.msra.mxu0 0.0
        %1040 = vmatpush.msra.mxu0 0.0
        %1041 = vmatpush.msra.mxu0 0.0
        %1042 = vmatpush.msra.mxu0 0.0
        %1043 = vmatpush.msra.mxu0 0.0
        %1044 = vmatpush.msra.mxu0 %v1007
        %1045 = vmatmul.f32.gmra.mxu0 %v1001
        %v1046 = vpop.f32.mrf.mxu0
        %v1047 = vadd.f32 %v998, %v1046
        %1048 = vdwg.mxu0
        %1049 = vrot.lane.b32.xlu0 %v262, 2
        %v1050 = vpop.permute.xlu0 %1049
        %1051 = vrot.lane.b32.xlu0 %v263, 2
        %v1052 = vpop.permute.xlu0 %1051
        %v1053 = vsel %vm397, %v1050, %v1052
        %v1057 = vmul.f32 %v936, %v1050
        %v1058 = vmul.f32 %v932, %v1053
        %v1059 = vmul.f32 %v937, %v1052
        %s1060 = scalar_lea.vmem %s3, 8
        %v1061 = vld [vmem:[%s1060] sm:$0xf]
        %1065 = vrot.lane.b32.xlu0 %v1057, 126
        %v1066 = vpop.permute.xlu0 %1065
        %1067 = vrot.lane.b32.xlu0 %v1058, 126
        %v1068 = vpop.permute.xlu0 %1067
        %1069 = vrot.lane.b32.xlu0 %v1059, 126
        %v1070 = vpop.permute.xlu0 %1069
        %v1071 = vsel %vm419, %v1066, %v1068
        %v1072 = vsel %vm419, %v1068, %v1070
        %v1074 = vsel %vm291, %v1061, 0
        %v1076 = vsel %vm267, %v1071, 0
        %v1078 = vsel %vm267, %v1072, 0
        %1080 = vmatpush.msra.mxu0 0.0
        %1081 = vmatpush.msra.mxu0 0.0
        %1082 = vmatpush.msra.mxu0 0.0
        %1083 = vmatpush.msra.mxu0 0.0
        %1084 = vmatpush.msra.mxu0 0.0
        %1085 = vmatpush.msra.mxu0 0.0
        %1086 = vmatpush.msra.mxu0 0.0
        %1087 = vmatpush.msra.mxu0 0.0
        %1088 = vmatpush.msra.mxu0 0.0
        %1089 = vmatpush.msra.mxu0 0.0
        %1090 = vmatpush.msra.mxu0 0.0
        %1091 = vmatpush.msra.mxu0 0.0
        %1092 = vmatpush.msra.mxu0 0.0
        %1093 = vmatpush.msra.mxu0 0.0
        %1094 = vmatpush.msra.mxu0 0.0
        %1095 = vmatpush.msra.mxu0 %v1076
        %1096 = vmatmul.f32.gmra.mxu0 %v1074
        %v1097 = vpop.f32.mrf.mxu0
        %v1098 = vadd.f32 0.0, %v1097
        %1099 = vdwg.mxu0
        %1100 = vmatpush.msra.mxu0 0.0
        %1101 = vmatpush.msra.mxu0 0.0
        %1102 = vmatpush.msra.mxu0 0.0
        %1103 = vmatpush.msra.mxu0 0.0
        %1104 = vmatpush.msra.mxu0 0.0
        %1105 = vmatpush.msra.mxu0 0.0
        %1106 = vmatpush.msra.mxu0 0.0
        %1107 = vmatpush.msra.mxu0 0.0
        %1108 = vmatpush.msra.mxu0 0.0
        %1109 = vmatpush.msra.mxu0 0.0
        %1110 = vmatpush.msra.mxu0 0.0
        %1111 = vmatpush.msra.mxu0 0.0
        %1112 = vmatpush.msra.mxu0 0.0
        %1113 = vmatpush.msra.mxu0 0.0
        %1114 = vmatpush.msra.mxu0 0.0
        %1115 = vmatpush.msra.mxu0 %v1078
        %1116 = vmatmul.f32.gmra.mxu0 %v1074
        %v1117 = vpop.f32.mrf.mxu0
        %v1118 = vadd.f32 0.0, %v1117
        %1119 = vdwg.mxu0
        %v1120 = vadd.f32 %v1027, %v1098
        %v1121 = vadd.f32 %v1047, %v1118
        %1122 = vrot.lane.b32.xlu0 %v256, 16
        %v1123 = vpop.permute.xlu0 %1122
        %1124 = vrot.lane.b32.xlu0 %v257, 16
        %v1125 = vpop.permute.xlu0 %1124
        %v1126 = vsel %vm474, %v1123, %v1125
        %v1130 = vmul.f32 %v936, %v1123
        %v1131 = vmul.f32 %v932, %v1126
        %v1132 = vmul.f32 %v937, %v1125
        %s1133 = scalar_lea.vmem %s3, 12
        %v1134 = vld [vmem:[%s1133] sm:$0xf]
        %1138 = vrot.lane.b32.xlu0 %v1130, 112
        %v1139 = vpop.permute.xlu0 %1138
        %1140 = vrot.lane.b32.xlu0 %v1131, 112
        %v1141 = vpop.permute.xlu0 %1140
        %1142 = vrot.lane.b32.xlu0 %v1132, 112
        %v1143 = vpop.permute.xlu0 %1142
        %v1144 = vsel %vm496, %v1139, %v1141
        %v1145 = vsel %vm496, %v1141, %v1143
        %v1147 = vsel %vm291, %v1134, 0
        %v1149 = vsel %vm267, %v1144, 0
        %v1151 = vsel %vm267, %v1145, 0
        %1153 = vmatpush.msra.mxu0 0.0
        %1154 = vmatpush.msra.mxu0 0.0
        %1155 = vmatpush.msra.mxu0 0.0
        %1156 = vmatpush.msra.mxu0 0.0
        %1157 = vmatpush.msra.mxu0 0.0
        %1158 = vmatpush.msra.mxu0 0.0
        %1159 = vmatpush.msra.mxu0 0.0
        %1160 = vmatpush.msra.mxu0 0.0
        %1161 = vmatpush.msra.mxu0 0.0
        %1162 = vmatpush.msra.mxu0 0.0
        %1163 = vmatpush.msra.mxu0 0.0
        %1164 = vmatpush.msra.mxu0 0.0
        %1165 = vmatpush.msra.mxu0 0.0
        %1166 = vmatpush.msra.mxu0 0.0
        %1167 = vmatpush.msra.mxu0 0.0
        %1168 = vmatpush.msra.mxu0 %v1149
        %1169 = vmatmul.f32.gmra.mxu0 %v1147
        %v1170 = vpop.f32.mrf.mxu0
        %v1171 = vadd.f32 0.0, %v1170
        %1172 = vdwg.mxu0
        %1173 = vmatpush.msra.mxu0 0.0
        %1174 = vmatpush.msra.mxu0 0.0
        %1175 = vmatpush.msra.mxu0 0.0
        %1176 = vmatpush.msra.mxu0 0.0
        %1177 = vmatpush.msra.mxu0 0.0
        %1178 = vmatpush.msra.mxu0 0.0
        %1179 = vmatpush.msra.mxu0 0.0
        %1180 = vmatpush.msra.mxu0 0.0
        %1181 = vmatpush.msra.mxu0 0.0
        %1182 = vmatpush.msra.mxu0 0.0
        %1183 = vmatpush.msra.mxu0 0.0
        %1184 = vmatpush.msra.mxu0 0.0
        %1185 = vmatpush.msra.mxu0 0.0
        %1186 = vmatpush.msra.mxu0 0.0
        %1187 = vmatpush.msra.mxu0 0.0
        %1188 = vmatpush.msra.mxu0 %v1151
        %1189 = vmatmul.f32.gmra.mxu0 %v1147
        %v1190 = vpop.f32.mrf.mxu0
        %v1191 = vadd.f32 0.0, %v1190
        %1192 = vdwg.mxu0
        %v1193 = vadd.f32 %v1120, %v1171
        %v1194 = vadd.f32 %v1121, %v1191
        %s1195 = scalar_lea.vmem %s3, 16
        %v1196 = vld [vmem:[%s1195] sm:$0xf]
        %1197 = vrot.lane.b32.xlu0 %v936, 111
        %v1198 = vpop.permute.xlu0 %1197
        %1199 = vrot.lane.b32.xlu0 %v932, 111
        %v1200 = vpop.permute.xlu0 %1199
        %1201 = vrot.lane.b32.xlu0 %v937, 111
        %v1202 = vpop.permute.xlu0 %1201
        %v1203 = vsel %vm562, %v1198, %v1200
        %v1204 = vsel %vm562, %v1200, %v1202
        %v1206 = vsel %vm291, %v1196, 0
        %v1208 = vsel %vm267, %v1203, 0
        %v1210 = vsel %vm267, %v1204, 0
        %1212 = vmatpush.msra.mxu0 0.0
        %1213 = vmatpush.msra.mxu0 0.0
        %1214 = vmatpush.msra.mxu0 0.0
        %1215 = vmatpush.msra.mxu0 0.0
        %1216 = vmatpush.msra.mxu0 0.0
        %1217 = vmatpush.msra.mxu0 0.0
        %1218 = vmatpush.msra.mxu0 0.0
        %1219 = vmatpush.msra.mxu0 0.0
        %1220 = vmatpush.msra.mxu0 0.0
        %1221 = vmatpush.msra.mxu0 0.0
        %1222 = vmatpush.msra.mxu0 0.0
        %1223 = vmatpush.msra.mxu0 0.0
        %1224 = vmatpush.msra.mxu0 0.0
        %1225 = vmatpush.msra.mxu0 0.0
        %1226 = vmatpush.msra.mxu0 0.0
        %1227 = vmatpush.msra.mxu0 %v1208
        %1228 = vmatmul.f32.gmra.mxu0 %v1206
        %v1229 = vpop.f32.mrf.mxu0
        %v1230 = vadd.f32 0.0, %v1229
        %1231 = vdwg.mxu0
        %1232 = vmatpush.msra.mxu0 0.0
        %1233 = vmatpush.msra.mxu0 0.0
        %1234 = vmatpush.msra.mxu0 0.0
        %1235 = vmatpush.msra.mxu0 0.0
        %1236 = vmatpush.msra.mxu0 0.0
        %1237 = vmatpush.msra.mxu0 0.0
        %1238 = vmatpush.msra.mxu0 0.0
        %1239 = vmatpush.msra.mxu0 0.0
        %1240 = vmatpush.msra.mxu0 0.0
        %1241 = vmatpush.msra.mxu0 0.0
        %1242 = vmatpush.msra.mxu0 0.0
        %1243 = vmatpush.msra.mxu0 0.0
        %1244 = vmatpush.msra.mxu0 0.0
        %1245 = vmatpush.msra.mxu0 0.0
        %1246 = vmatpush.msra.mxu0 0.0
        %1247 = vmatpush.msra.mxu0 %v1210
        %1248 = vmatmul.f32.gmra.mxu0 %v1206
        %v1249 = vpop.f32.mrf.mxu0
        %v1250 = vadd.f32 0.0, %v1249
        %1251 = vdwg.mxu0
        %v1252 = vadd.f32 %v1193, %v1230
        %v1253 = vadd.f32 %v1194, %v1250
        %1254 = vrot.lane.b32.xlu0 %v262, 18
        %v1255 = vpop.permute.xlu0 %1254
        %1256 = vrot.lane.b32.xlu0 %v263, 18
        %v1257 = vpop.permute.xlu0 %1256
        %v1258 = vsel %vm617, %v1255, %v1257
        %v1262 = vmul.f32 %v936, %v1255
        %v1263 = vmul.f32 %v932, %v1258
        %v1264 = vmul.f32 %v937, %v1257
        %s1265 = scalar_lea.vmem %s3, 20
        %v1266 = vld [vmem:[%s1265] sm:$0xf]
        %1270 = vrot.lane.b32.xlu0 %v1262, 110
        %v1271 = vpop.permute.xlu0 %1270
        %1272 = vrot.lane.b32.xlu0 %v1263, 110
        %v1273 = vpop.permute.xlu0 %1272
        %1274 = vrot.lane.b32.xlu0 %v1264, 110
        %v1275 = vpop.permute.xlu0 %1274
        %v1276 = vsel %vm639, %v1271, %v1273
        %v1277 = vsel %vm639, %v1273, %v1275
        %v1279 = vsel %vm291, %v1266, 0
        %v1281 = vsel %vm267, %v1276, 0
        %v1283 = vsel %vm267, %v1277, 0
        %1285 = vmatpush.msra.mxu0 0.0
        %1286 = vmatpush.msra.mxu0 0.0
        %1287 = vmatpush.msra.mxu0 0.0
        %1288 = vmatpush.msra.mxu0 0.0
        %1289 = vmatpush.msra.mxu0 0.0
        %1290 = vmatpush.msra.mxu0 0.0
        %1291 = vmatpush.msra.mxu0 0.0
        %1292 = vmatpush.msra.mxu0 0.0
        %1293 = vmatpush.msra.mxu0 0.0
        %1294 = vmatpush.msra.mxu0 0.0
        %1295 = vmatpush.msra.mxu0 0.0
        %1296 = vmatpush.msra.mxu0 0.0
        %1297 = vmatpush.msra.mxu0 0.0
        %1298 = vmatpush.msra.mxu0 0.0
        %1299 = vmatpush.msra.mxu0 0.0
        %1300 = vmatpush.msra.mxu0 %v1281
        %1301 = vmatmul.f32.gmra.mxu0 %v1279
        %v1302 = vpop.f32.mrf.mxu0
        %v1303 = vadd.f32 0.0, %v1302
        %1304 = vdwg.mxu0
        %1305 = vmatpush.msra.mxu0 0.0
        %1306 = vmatpush.msra.mxu0 0.0
        %1307 = vmatpush.msra.mxu0 0.0
        %1308 = vmatpush.msra.mxu0 0.0
        %1309 = vmatpush.msra.mxu0 0.0
        %1310 = vmatpush.msra.mxu0 0.0
        %1311 = vmatpush.msra.mxu0 0.0
        %1312 = vmatpush.msra.mxu0 0.0
        %1313 = vmatpush.msra.mxu0 0.0
        %1314 = vmatpush.msra.mxu0 0.0
        %1315 = vmatpush.msra.mxu0 0.0
        %1316 = vmatpush.msra.mxu0 0.0
        %1317 = vmatpush.msra.mxu0 0.0
        %1318 = vmatpush.msra.mxu0 0.0
        %1319 = vmatpush.msra.mxu0 0.0
        %1320 = vmatpush.msra.mxu0 %v1283
        %1321 = vmatmul.f32.gmra.mxu0 %v1279
        %v1322 = vpop.f32.mrf.mxu0
        %v1323 = vadd.f32 0.0, %v1322
        %1324 = vdwg.mxu0
        %v1325 = vadd.f32 %v1252, %v1303
        %v1326 = vadd.f32 %v1253, %v1323
        %1327 = vrot.lane.b32.xlu0 %v256, 32
        %v1328 = vpop.permute.xlu0 %1327
        %1329 = vrot.lane.b32.xlu0 %v257, 32
        %v1330 = vpop.permute.xlu0 %1329
        %v1331 = vsel %vm694, %v1328, %v1330
        %v1335 = vmul.f32 %v936, %v1328
        %v1336 = vmul.f32 %v932, %v1331
        %v1337 = vmul.f32 %v937, %v1330
        %s1338 = scalar_lea.vmem %s3, 24
        %v1339 = vld [vmem:[%s1338] sm:$0xf]
        %1343 = vrot.lane.b32.xlu0 %v1335, 96
        %v1344 = vpop.permute.xlu0 %1343
        %1345 = vrot.lane.b32.xlu0 %v1336, 96
        %v1346 = vpop.permute.xlu0 %1345
        %1347 = vrot.lane.b32.xlu0 %v1337, 96
        %v1348 = vpop.permute.xlu0 %1347
        %v1349 = vsel %vm716, %v1344, %v1346
        %v1350 = vsel %vm716, %v1346, %v1348
        %v1352 = vsel %vm291, %v1339, 0
        %v1354 = vsel %vm267, %v1349, 0
        %v1356 = vsel %vm267, %v1350, 0
        %1358 = vmatpush.msra.mxu0 0.0
        %1359 = vmatpush.msra.mxu0 0.0
        %1360 = vmatpush.msra.mxu0 0.0
        %1361 = vmatpush.msra.mxu0 0.0
        %1362 = vmatpush.msra.mxu0 0.0
        %1363 = vmatpush.msra.mxu0 0.0
        %1364 = vmatpush.msra.mxu0 0.0
        %1365 = vmatpush.msra.mxu0 0.0
        %1366 = vmatpush.msra.mxu0 0.0
        %1367 = vmatpush.msra.mxu0 0.0
        %1368 = vmatpush.msra.mxu0 0.0
        %1369 = vmatpush.msra.mxu0 0.0
        %1370 = vmatpush.msra.mxu0 0.0
        %1371 = vmatpush.msra.mxu0 0.0
        %1372 = vmatpush.msra.mxu0 0.0
        %1373 = vmatpush.msra.mxu0 %v1354
        %1374 = vmatmul.f32.gmra.mxu0 %v1352
        %v1375 = vpop.f32.mrf.mxu0
        %v1376 = vadd.f32 0.0, %v1375
        %1377 = vdwg.mxu0
        %1378 = vmatpush.msra.mxu0 0.0
        %1379 = vmatpush.msra.mxu0 0.0
        %1380 = vmatpush.msra.mxu0 0.0
        %1381 = vmatpush.msra.mxu0 0.0
        %1382 = vmatpush.msra.mxu0 0.0
        %1383 = vmatpush.msra.mxu0 0.0
        %1384 = vmatpush.msra.mxu0 0.0
        %1385 = vmatpush.msra.mxu0 0.0
        %1386 = vmatpush.msra.mxu0 0.0
        %1387 = vmatpush.msra.mxu0 0.0
        %1388 = vmatpush.msra.mxu0 0.0
        %1389 = vmatpush.msra.mxu0 0.0
        %1390 = vmatpush.msra.mxu0 0.0
        %1391 = vmatpush.msra.mxu0 0.0
        %1392 = vmatpush.msra.mxu0 0.0
        %1393 = vmatpush.msra.mxu0 %v1356
        %1394 = vmatmul.f32.gmra.mxu0 %v1352
        %v1395 = vpop.f32.mrf.mxu0
        %v1396 = vadd.f32 0.0, %v1395
        %1397 = vdwg.mxu0
        %v1398 = vadd.f32 %v1325, %v1376
        %v1399 = vadd.f32 %v1326, %v1396
        %s1400 = scalar_lea.vmem %s3, 28
        %v1401 = vld [vmem:[%s1400] sm:$0xf]
        %1402 = vrot.lane.b32.xlu0 %v936, 95
        %v1403 = vpop.permute.xlu0 %1402
        %1404 = vrot.lane.b32.xlu0 %v932, 95
        %v1405 = vpop.permute.xlu0 %1404
        %1406 = vrot.lane.b32.xlu0 %v937, 95
        %v1407 = vpop.permute.xlu0 %1406
        %v1408 = vsel %vm782, %v1403, %v1405
        %v1409 = vsel %vm782, %v1405, %v1407
        %v1411 = vsel %vm291, %v1401, 0
        %v1413 = vsel %vm267, %v1408, 0
        %v1415 = vsel %vm267, %v1409, 0
        %1417 = vmatpush.msra.mxu0 0.0
        %1418 = vmatpush.msra.mxu0 0.0
        %1419 = vmatpush.msra.mxu0 0.0
        %1420 = vmatpush.msra.mxu0 0.0
        %1421 = vmatpush.msra.mxu0 0.0
        %1422 = vmatpush.msra.mxu0 0.0
        %1423 = vmatpush.msra.mxu0 0.0
        %1424 = vmatpush.msra.mxu0 0.0
        %1425 = vmatpush.msra.mxu0 0.0
        %1426 = vmatpush.msra.mxu0 0.0
        %1427 = vmatpush.msra.mxu0 0.0
        %1428 = vmatpush.msra.mxu0 0.0
        %1429 = vmatpush.msra.mxu0 0.0
        %1430 = vmatpush.msra.mxu0 0.0
        %1431 = vmatpush.msra.mxu0 0.0
        %1432 = vmatpush.msra.mxu0 %v1413
        %1433 = vmatmul.f32.gmra.mxu0 %v1411
        %v1434 = vpop.f32.mrf.mxu0
        %v1435 = vadd.f32 0.0, %v1434
        %1436 = vdwg.mxu0
        %1437 = vmatpush.msra.mxu0 0.0
        %1438 = vmatpush.msra.mxu0 0.0
        %1439 = vmatpush.msra.mxu0 0.0
        %1440 = vmatpush.msra.mxu0 0.0
        %1441 = vmatpush.msra.mxu0 0.0
        %1442 = vmatpush.msra.mxu0 0.0
        %1443 = vmatpush.msra.mxu0 0.0
        %1444 = vmatpush.msra.mxu0 0.0
        %1445 = vmatpush.msra.mxu0 0.0
        %1446 = vmatpush.msra.mxu0 0.0
        %1447 = vmatpush.msra.mxu0 0.0
        %1448 = vmatpush.msra.mxu0 0.0
        %1449 = vmatpush.msra.mxu0 0.0
        %1450 = vmatpush.msra.mxu0 0.0
        %1451 = vmatpush.msra.mxu0 0.0
        %1452 = vmatpush.msra.mxu0 %v1415
        %1453 = vmatmul.f32.gmra.mxu0 %v1411
        %v1454 = vpop.f32.mrf.mxu0
        %v1455 = vadd.f32 0.0, %v1454
        %1456 = vdwg.mxu0
        %v1457 = vadd.f32 %v1398, %v1435
        %v1458 = vadd.f32 %v1399, %v1455
        %1459 = vrot.lane.b32.xlu0 %v262, 34
        %v1460 = vpop.permute.xlu0 %1459
        %1461 = vrot.lane.b32.xlu0 %v263, 34
        %v1462 = vpop.permute.xlu0 %1461
        %v1463 = vsel %vm837, %v1460, %v1462
        %v1467 = vmul.f32 %v936, %v1460
        %v1468 = vmul.f32 %v932, %v1463
        %v1469 = vmul.f32 %v937, %v1462
        %s1470 = scalar_lea.vmem %s3, 32
        %v1471 = vld [vmem:[%s1470] sm:$0xf]
        %1475 = vrot.lane.b32.xlu0 %v1467, 94
        %v1476 = vpop.permute.xlu0 %1475
        %1477 = vrot.lane.b32.xlu0 %v1468, 94
        %v1478 = vpop.permute.xlu0 %1477
        %1479 = vrot.lane.b32.xlu0 %v1469, 94
        %v1480 = vpop.permute.xlu0 %1479
        %v1481 = vsel %vm859, %v1476, %v1478
        %v1482 = vsel %vm859, %v1478, %v1480
        %v1484 = vsel %vm291, %v1471, 0
        %v1486 = vsel %vm267, %v1481, 0
        %v1488 = vsel %vm267, %v1482, 0
        %1490 = vmatpush.msra.mxu0 0.0
        %1491 = vmatpush.msra.mxu0 0.0
        %1492 = vmatpush.msra.mxu0 0.0
        %1493 = vmatpush.msra.mxu0 0.0
        %1494 = vmatpush.msra.mxu0 0.0
        %1495 = vmatpush.msra.mxu0 0.0
        %1496 = vmatpush.msra.mxu0 0.0
        %1497 = vmatpush.msra.mxu0 0.0
        %1498 = vmatpush.msra.mxu0 0.0
        %1499 = vmatpush.msra.mxu0 0.0
        %1500 = vmatpush.msra.mxu0 0.0
        %1501 = vmatpush.msra.mxu0 0.0
        %1502 = vmatpush.msra.mxu0 0.0
        %1503 = vmatpush.msra.mxu0 0.0
        %1504 = vmatpush.msra.mxu0 0.0
        %1505 = vmatpush.msra.mxu0 %v1486
        %1506 = vmatmul.f32.gmra.mxu0 %v1484
        %v1507 = vpop.f32.mrf.mxu0
        %v1508 = vadd.f32 0.0, %v1507
        %1509 = vdwg.mxu0
        %1510 = vmatpush.msra.mxu0 0.0
        %1511 = vmatpush.msra.mxu0 0.0
        %1512 = vmatpush.msra.mxu0 0.0
        %1513 = vmatpush.msra.mxu0 0.0
        %1514 = vmatpush.msra.mxu0 0.0
        %1515 = vmatpush.msra.mxu0 0.0
        %1516 = vmatpush.msra.mxu0 0.0
        %1517 = vmatpush.msra.mxu0 0.0
        %1518 = vmatpush.msra.mxu0 0.0
        %1519 = vmatpush.msra.mxu0 0.0
        %1520 = vmatpush.msra.mxu0 0.0
        %1521 = vmatpush.msra.mxu0 0.0
        %1522 = vmatpush.msra.mxu0 0.0
        %1523 = vmatpush.msra.mxu0 0.0
        %1524 = vmatpush.msra.mxu0 0.0
        %1525 = vmatpush.msra.mxu0 %v1488
        %1526 = vmatmul.f32.gmra.mxu0 %v1484
        %v1527 = vpop.f32.mrf.mxu0
        %v1528 = vadd.f32 0.0, %v1527
        %1529 = vdwg.mxu0
        %v1530 = vadd.f32 %v1457, %v1508
        %v1531 = vadd.f32 %v1458, %v1528
        %v1532 = vld [vmem:[%s4] sm:$0xf]
        %1534 = vset.pattern.permute.xlu0 0
        %1535 = vperm.xlu0 %1534, %v1532
        %v1536 = vpop.permute.xlu0 %1535
        %v1538 = vadd.f32 %v1530, %v1536
        %v1539 = vadd.f32 %v1531, %v1536
        %1540 = vst [vmem:[#allocation1] ss:$2 sm:$0xff] %v223
        %s1541 = scalar_lea.vmem [#allocation1], 16
        %1542 = vst [vmem:[%s1541] ss:$2 sm:$0xff] %v224
        %v1543 = vld.sshfl [vmem:[#allocation1] sm:$0xff pattern:$0x75316420]
        %v1544 = vld.sshfl [vmem:[#allocation1 + $0x8] sm:$0xff pattern:$0x75316420]
        %v1545 = vld.sshfl [vmem:[#allocation1 + $0x10] sm:$0xff pattern:$0x75316420]
        %1546 = vrot.lane.b32.xlu0 %v1543, 111
        %v1547 = vpop.permute.xlu0 %1546
        %1548 = vrot.lane.b32.xlu0 %v1544, 111
        %v1549 = vpop.permute.xlu0 %1548
        %1550 = vrot.lane.b32.xlu0 %v1545, 111
        %v1551 = vpop.permute.xlu0 %1550
        %v1552 = vsel %vm562, %v1547, %v1549
        %v1553 = vsel %vm562, %v1549, %v1551
        %v1556 = vadd.f32 %v1538, %v1552
        %v1557 = vadd.f32 %v1539, %v1553
        %vm1558 = vcmp.gt.f32.partialorder %v1556, 0.0
        %vm1559 = vcmp.gt.f32.partialorder %v1557, 0.0
        %v1560 = vmul.f32 %v1556, 0.2
        %v1561 = vmul.f32 %v1557, 0.2
        %v1562 = vsel %vm1558, %v1556, %v1560
        %v1563 = vsel %vm1559, %v1557, %v1561
        %v1566 = vrot.slane %v1563, 4
        %v1567 = vsel %vm267, %v1562, %v1566
        %1569 = vst [vmem:[%s217] sm:$0xff] %v1567
        %s1570 = sand.u32 %s137, 1
        %s1571 = scalar_lea.sflag [#allocation3], %s1570
        %s1572 = sand.u32 %s137, 1
        %s1573 = smul.addr %s1572, 8
        %s1574 = scalar_lea.vmem [#allocation2], %s1573
        // Predicated region
        $region41: #{tpu_custom_call.1} parent=39 // pred_check
          %p1575 = pneg %p147
        $region42: #{tpu_custom_call.1} parent=39 // pred_check_branch
          %1577 = sbr.rel (%p1575) target = $region44
        $region43: #{tpu_custom_call.1} parent=39 // pred_region
          %1579 = vsyncadd %s1571, 0
          %s1580 = smul.addr %s19, 2
          %s1581 = smul.addr %s1580, 4
          %s1582 = scalar_lea.hbm %s5, %s1581
          %s1584 = sshll.u32 %s1574, 4
          %s1585 = int_to_ptr.vmem [resolvable:$true] %s1584
          %s1586 = sshll.u32 %s1582, 4
          %s1587 = int_to_ptr.hbm [resolvable:$true] %s1586
          %1589 = dma.vmem_to_hbm [thread:$0]  %s1585, 128, %s1587, %s1571
        $region44: #{tpu_custom_call.1} parent=39 // pred_fallthru
          _
      $region40: #{tpu_custom_call.1} parent=5 // pred_fallthru
        _
      %p1590 = scmp.le.s32.totalorder 2, %s14
      // Predicated region
      $region45: #{tpu_custom_call.1} parent=5 // pred_check
        %p1591 = pneg %p1590
      $region46: #{tpu_custom_call.1} parent=5 // pred_check_branch
        %1593 = sbr.rel (%p1591) target = $region48
      $region47: #{tpu_custom_call.1} parent=5 // pred_region
        %s1594 = ssub.s32 %s14, 2
        // Predicated region
        $region49: #{tpu_custom_call.1} parent=47 // pred_check
          %p1595 = pneg %p153
        $region50: #{tpu_custom_call.1} parent=47 // pred_check_branch
          %1597 = sbr.rel (%p1595) target = $region52
        $region51: #{tpu_custom_call.1} parent=47 // pred_region
          %s1598 = sand.u32 %s138, 1
          %s1599 = scalar_lea.sflag [#allocation3], %s1598
          %s1600 = sand.u32 %s138, 1
          %s1601 = smul.addr %s1600, 8
          %s1602 = scalar_lea.vmem [#allocation2], %s1601
          %1604 = dma.done %s1599, 128
        $region52: #{tpu_custom_call.1} parent=47 // pred_fallthru
          _
      $region48: #{tpu_custom_call.1} parent=5 // pred_fallthru
        _
    $region6: #{tpu_custom_call.1} parent=1 // loop_footer
      %s18 = sadd.s32 1, %s14
    $region7: #{tpu_custom_call.1} parent=1 // loop_footer_branch
      %13 = sbr.rel target = $region3
    $region8: #{tpu_custom_call.1} parent=1 // loop_exit
      _
    %1605 = vsyncpa [#allocation3], 1
    %s1606 = scalar_lea.sflag [#allocation3], 1
    %1607 = vsyncpa %s1606, 1

</llo_original>
